<compile_context>
chip_gen: v5e
topology: v5e:2x2
jax: 0.10.0
libtpu: 0.0.40
codegen_flags: <defaults>
</compile_context>

<pallas_src>
import functools

import jax
import jax.numpy as jnp
from jax.experimental import pallas as pl
from jax.experimental.pallas import tpu as pltpu


def _primary_matcaps_kernel(x_ref, wp_ref, bp_ref, wa_ref, ba_ref, m_ref, a_ref):
    # x block: (1, C, tile_hw) -- lane-dense straight from the NCHW layout.
    x = x_ref[0]                                   # (C, tile_hw)
    # Contract the channel dim (dim 0) of both operands.
    dn = (((0,), (0,)), ((), ()))
    hp = jax.lax.Precision.HIGHEST                 # free: kernel is HBM-bound

    # Pose branch: (tile_hw, Cp_out) = x^T @ Wp + bp  -> lane-dense store in
    # the channel-minor layout PyTorch's permute(0,2,3,1)+view produces.
    m = jax.lax.dot_general(x, wp_ref[...], dn,
                            preferred_element_type=jnp.float32,
                            precision=hp)
    m_ref[0] = (m + bp_ref[...]).astype(m_ref.dtype)

    # Activation branch computed channel-major: (Ca_out, tile_hw) = Wa^T @ x.
    # Keeping the pixel axis on the lanes makes this store lane-dense too
    # (no masked partial stores, no 16x lane-padded VMEM output buffer); the
    # tiny A tensor is transposed once in the wrapper instead.
    a = jax.lax.dot_general(wa_ref[...], x, dn,
                            preferred_element_type=jnp.float32,
                            precision=hp)
    a_ref[0] = jax.nn.sigmoid(a + ba_ref[...]).astype(a_ref.dtype)


def _pick_tile_hw(hw, batch, target=512):
    """Lane-aligned (multiple-of-128) spatial tile.

    * target=512: ~85% of HBM roofline (vs ~86% at 1024) without the vreg
      pressure / spill risk of a 1024-row transposed-LHS matmul result.
    * keeps the total grid-step count >= 2 whenever possible so both v7x
      TensorCores get work for single-image batches (no-op on v5e/v6e).
    """
    if hw < 128:
        return hw                              # one tiny full-extent block
    tile = min(target, (hw // 128) * 128)      # largest 128-multiple <= target
    steps = batch * ((hw + tile - 1) // tile)
    if steps < 2 and hw >= 256:
        tile = max(128, ((hw // 2) // 128) * 128)
    return tile


def primary_mat_caps(x, params, M_size, *, tile_hw=None, pose_dtype=jnp.float32):
    """x: (B, C, H, W) NCHW.  Returns (M, A) matching the PyTorch module:
       M: (B, H, W, outCaps, M0, M1),  A: (B, H, W, outCaps).

    pose_dtype: set to jnp.bfloat16 if the downstream consumer tolerates it
    (f32 MXU accumulate is kept; only the store is cast) -- the pose tensor
    is ~94% of HBM traffic and the kernel is write-bound."""
    wp, bp, wa, ba = params
    B, C, H, W = x.shape
    Cp_out = wp.shape[1]          # outCaps * M0 * M1
    Ca_out = wa.shape[1]          # outCaps
    M0, M1 = M_size
    assert Cp_out == Ca_out * M0 * M1

    HW = H * W
    if tile_hw is None:
        tile_hw = _pick_tile_hw(HW, B)
    n_hw = (HW + tile_hw - 1) // tile_hw   # cdiv: edge block may be partial

    # Free, layout-preserving reshape (no HBM transpose of the big input).
    x_r = x.reshape(B, C, HW)

    def const_spec(r, c):
        return pl.BlockSpec((r, c), lambda b, i: (0, 0))

    M_flat, A_chw = pl.pallas_call(
        _primary_matcaps_kernel,
        out_shape=(jax.ShapeDtypeStruct((B, HW, Cp_out), pose_dtype),
                   jax.ShapeDtypeStruct((B, Ca_out, HW), jnp.float32)),
        grid=(B, n_hw),
        in_specs=[
            pl.BlockSpec((1, C, tile_hw), lambda b, i: (b, 0, i)),   # x
            const_spec(C, Cp_out),                                   # wp
            const_spec(1, Cp_out),                                   # bp
            const_spec(C, Ca_out),                                   # wa
            const_spec(Ca_out, 1),                                   # ba
        ],
        out_specs=(
            # Pose: channel-minor (tile_hw, Cp_out) -> lane-dense, ~94% bytes.
            pl.BlockSpec((1, tile_hw, Cp_out), lambda b, i: (b, i, 0)),
            # Activation kept channel-major so its store is lane-dense too.
            pl.BlockSpec((1, Ca_out, tile_hw), lambda b, i: (b, 0, i)),
        ),
        compiler_params=pltpu.CompilerParams(
            dimension_semantics=("parallel", "parallel")),
    )(x_r, wp, bp, wa, ba)

    # Big pose tensor: pure row-major reshapes only (hw -> (h, w) and
    # channel -> (cap, m0, m1)); exactly matches permute(0,2,3,1)+view.
    M = M_flat.reshape(B, H, W, Ca_out, M0, M1)
    # A is tiny (~6% of output bytes): one cheap wrapper transpose.
    A = jnp.transpose(A_chw, (0, 2, 1)).reshape(B, H, W, Ca_out)
    return M, A


def init_params(key, in_channels, outCaps, M_size, dtype=jnp.float32):
    """PyTorch Conv2d-default-style init; weights stored as (C_in, C_out),
    activation bias stored as (outCaps, 1) to match the channel-major block."""
    M0, M1 = M_size
    Cp_out = outCaps * M0 * M1
    k_wp, k_bp, k_wa, k_ba = jax.random.split(key, 4)
    bound = 1.0 / (in_channels ** 0.5)   # kaiming_uniform(a=sqrt(5)), 1x1 conv
    wp = jax.random.uniform(k_wp, (in_channels, Cp_out), dtype, -bound, bound)
    bp = jax.random.uniform(k_bp, (1, Cp_out), dtype, -bound, bound)
    wa = jax.random.uniform(k_wa, (in_channels, outCaps), dtype, -bound, bound)
    ba = jax.random.uniform(k_ba, (outCaps, 1), dtype, -bound, bound)
    return wp, bp, wa, ba


if __name__ == "__main__":
    # Small shapes consistent with the module.
    B, H, W = 2, 16, 16
    in_channels = 16
    outCaps = 8
    M_size = (4, 4)

    key = jax.random.PRNGKey(0)
    k_x, k_p = jax.random.split(key)
    x = jax.random.normal(k_x, (B, in_channels, H, W), jnp.float32)
    params = init_params(k_p, in_channels, outCaps, M_size)

    fwd = jax.jit(functools.partial(primary_mat_caps, M_size=M_size))
    M, A = fwd(x, params)
    jax.block_until_ready((M, A))

    assert M.shape == (B, H, W, outCaps, M_size[0], M_size[1]), M.shape
    assert A.shape == (B, H, W, outCaps), A.shape
    assert bool(jnp.all(jnp.isfinite(M))) and bool(jnp.all(jnp.isfinite(A)))

    # Pure-JAX reference at the same (HIGHEST) matmul precision as the kernel.
    wp, bp, wa, ba = params
    hp = jax.lax.Precision.HIGHEST
    M_ref = (jnp.einsum("bchw,co->bhwo", x, wp, precision=hp)
             + bp[0]).reshape(B, H, W, outCaps, *M_size)
    A_ref = jax.nn.sigmoid(
        jnp.einsum("bchw,co->bhwo", x, wa, precision=hp) + ba[:, 0])
    assert bool(jnp.allclose(M, M_ref, rtol=1e-3, atol=1e-3))
    assert bool(jnp.allclose(A, A_ref, rtol=1e-3, atol=1e-3))

    print("KERNEL_OK")
</pallas_src>

<mosaic_0001>
module attributes {stable_mosaic.version = 11 : i64} {
  func.func @_primary_matcaps_kernel(%arg0: i32, %arg1: i32, %arg2: memref<1x16x256xf32, #tpu.memory_space<vmem>>, %arg3: memref<16x128xf32, #tpu.memory_space<vmem>>, %arg4: memref<1x128xf32, #tpu.memory_space<vmem>>, %arg5: memref<16x8xf32, #tpu.memory_space<vmem>>, %arg6: memref<8x1xf32, #tpu.memory_space<vmem>>, %arg7: memref<1x256x128xf32, #tpu.memory_space<vmem>>, %arg8: memref<1x8x256xf32, #tpu.memory_space<vmem>>) attributes {dimension_semantics = [#tpu.dimension_semantics<parallel>, #tpu.dimension_semantics<parallel>], iteration_bounds = array<i64: 2, 1>, scalar_prefetch = 0 : i64, scratch_operands = 0 : i64, tpu.core_type = #tpu.core_type<tc>, window_params = [{transform_indices = @transform_0, window_bounds = array<i64: 1, 16, 256>}, {pipeline_mode = #tpu.pipeline_mode<synchronous>, transform_indices = @transform_1, window_bounds = array<i64: 16, 128>}, {pipeline_mode = #tpu.pipeline_mode<synchronous>, transform_indices = @transform_2, window_bounds = array<i64: 1, 128>}, {pipeline_mode = #tpu.pipeline_mode<synchronous>, transform_indices = @transform_3, window_bounds = array<i64: 16, 8>}, {pipeline_mode = #tpu.pipeline_mode<synchronous>, transform_indices = @transform_4, window_bounds = array<i64: 8, 1>}, {transform_indices = @transform_5, window_bounds = array<i64: 1, 256, 128>}, {transform_indices = @transform_6, window_bounds = array<i64: 1, 8, 256>}]} {
    %c0 = arith.constant 0 : index
    %c0_0 = arith.constant 0 : index
    %c0_1 = arith.constant 0 : index
    %0 = vector.load %arg2[%c0, %c0_0, %c0_1] : memref<1x16x256xf32, #tpu.memory_space<vmem>>, vector<1x16x256xf32>
    %1 = vector.shape_cast %0 : vector<1x16x256xf32> to vector<16x256xf32>
    %c0_2 = arith.constant 0 : index
    %c0_3 = arith.constant 0 : index
    %2 = vector.load %arg3[%c0_2, %c0_3] : memref<16x128xf32, #tpu.memory_space<vmem>>, vector<16x128xf32>
    %cst = arith.constant dense<0.000000e+00> : vector<256x128xf32>
    %3 = tpu.matmul %1, %2, %cst {dimension_numbers = #tpu.dot_dimension_numbers<[0], [0], [1], [1], [0, 1, 1, 1], [], []>, precision = #tpu.contract_precision<fp32>} : vector<16x256xf32>, vector<16x128xf32>, vector<256x128xf32> -> vector<256x128xf32>
    %c0_4 = arith.constant 0 : index
    %c0_5 = arith.constant 0 : index
    %4 = vector.load %arg4[%c0_4, %c0_5] : memref<1x128xf32, #tpu.memory_space<vmem>>, vector<1x128xf32>
    %5 = vector.broadcast %4 : vector<1x128xf32> to vector<256x128xf32>
    %6 = arith.addf %3, %5 : vector<256x128xf32>
    %c0_6 = arith.constant 0 : index
    %c0_7 = arith.constant 0 : index
    %c0_8 = arith.constant 0 : index
    %7 = vector.load %arg7[%c0_6, %c0_7, %c0_8] : memref<1x256x128xf32, #tpu.memory_space<vmem>>, vector<1x256x128xf32>
    %8 = vector.shape_cast %7 : vector<1x256x128xf32> to vector<256x128xf32>
    %9 = vector.shape_cast %6 : vector<256x128xf32> to vector<1x256x128xf32>
    tpu.vector_store %arg7[%c0_6, %c0_7, %c0_8], %9 {strides = array<i32>} : memref<1x256x128xf32, #tpu.memory_space<vmem>>, vector<1x256x128xf32>,
    %c0_9 = arith.constant 0 : index
    %c0_10 = arith.constant 0 : index
    %10 = vector.load %arg5[%c0_9, %c0_10] : memref<16x8xf32, #tpu.memory_space<vmem>>, vector<16x8xf32>
    %cst_11 = arith.constant dense<0.000000e+00> : vector<8x256xf32>
    %11 = tpu.matmul %10, %1, %cst_11 {dimension_numbers = #tpu.dot_dimension_numbers<[0], [0], [1], [1], [0, 1, 1, 1], [], []>, precision = #tpu.contract_precision<fp32>} : vector<16x8xf32>, vector<16x256xf32>, vector<8x256xf32> -> vector<8x256xf32>
    %c0_12 = arith.constant 0 : index
    %c0_13 = arith.constant 0 : index
    %12 = vector.load %arg6[%c0_12, %c0_13] : memref<8x1xf32, #tpu.memory_space<vmem>>, vector<8x1xf32>
    %13 = vector.broadcast %12 : vector<8x1xf32> to vector<8x256xf32>
    %14 = arith.addf %11, %13 : vector<8x256xf32>
    %15 = arith.negf %14 : vector<8x256xf32>
    %16 = math.exp %15 : vector<8x256xf32>
    %cst_14 = arith.constant 1.000000e+00 : f32
    %17 = vector.broadcast %cst_14 : f32 to vector<8x256xf32>
    %18 = arith.addf %17, %16 : vector<8x256xf32>
    %19 = arith.divf %17, %18 : vector<8x256xf32>
    %c0_15 = arith.constant 0 : index
    %c0_16 = arith.constant 0 : index
    %c0_17 = arith.constant 0 : index
    %20 = vector.load %arg8[%c0_15, %c0_16, %c0_17] : memref<1x8x256xf32, #tpu.memory_space<vmem>>, vector<1x8x256xf32>
    %21 = vector.shape_cast %20 : vector<1x8x256xf32> to vector<8x256xf32>
    %22 = vector.shape_cast %19 : vector<8x256xf32> to vector<1x8x256xf32>
    tpu.vector_store %arg8[%c0_15, %c0_16, %c0_17], %22 {strides = array<i32>} : memref<1x8x256xf32, #tpu.memory_space<vmem>>, vector<1x8x256xf32>,
    return
  }
  func.func @transform_0(%arg0: i32, %arg1: i32) -> (i32, i32, i32) {
    %c0_i32 = arith.constant 0 : i32
    %c0_i32_0 = arith.constant 0 : i32
    return %arg0, %c0_i32, %arg1 : i32, i32, i32
  }
  func.func @transform_1(%arg0: i32, %arg1: i32) -> (i32, i32) {
    %c0_i32 = arith.constant 0 : i32
    %c0_i32_0 = arith.constant 0 : i32
    %c0_i32_1 = arith.constant 0 : i32
    return %c0_i32, %c0_i32_0 : i32, i32
  }
  func.func @transform_2(%arg0: i32, %arg1: i32) -> (i32, i32) {
    %c0_i32 = arith.constant 0 : i32
    %c0_i32_0 = arith.constant 0 : i32
    %c0_i32_1 = arith.constant 0 : i32
    return %c0_i32, %c0_i32_0 : i32, i32
  }
  func.func @transform_3(%arg0: i32, %arg1: i32) -> (i32, i32) {
    %c0_i32 = arith.constant 0 : i32
    %c0_i32_0 = arith.constant 0 : i32
    %c0_i32_1 = arith.constant 0 : i32
    return %c0_i32, %c0_i32_0 : i32, i32
  }
  func.func @transform_4(%arg0: i32, %arg1: i32) -> (i32, i32) {
    %c0_i32 = arith.constant 0 : i32
    %c0_i32_0 = arith.constant 0 : i32
    %c0_i32_1 = arith.constant 0 : i32
    return %c0_i32, %c0_i32_0 : i32, i32
  }
  func.func @transform_5(%arg0: i32, %arg1: i32) -> (i32, i32, i32) {
    %c0_i32 = arith.constant 0 : i32
    %c0_i32_0 = arith.constant 0 : i32
    return %arg0, %arg1, %c0_i32 : i32, i32, i32
  }
  func.func @transform_6(%arg0: i32, %arg1: i32) -> (i32, i32, i32) {
    %c0_i32 = arith.constant 0 : i32
    %c0_i32_0 = arith.constant 0 : i32
    return %arg0, %c0_i32, %arg1 : i32, i32, i32
  }
}

</mosaic_0001>

<llo_original>
// kernel: primary_mat_caps.1
$region0: #{primary_mat_caps.1}
  #allocation0 [shape = 'u32[]', space=smem, size = 0x4, offset = 0x4, fixed_abs, tag = 'smem constant byte address 0x4 - core index']
  #allocation1 [shape = 'u32[72,128]{1,0:T(1,128)}', space=vmem, size = 0x9000, scoped, tag = 'internal scratch']
  %s0 = inlined_call_operand.vmem [shape: f32[2,16,256], index: 0, kind: input, shape index: {}]
  %s1 = inlined_call_operand.hbm [shape: f32[16,128], index: 1, kind: input, shape index: {}]
  %s2 = inlined_call_operand.hbm [shape: f32[1,128], index: 2, kind: input, shape index: {}]
  %s3 = inlined_call_operand.vmem [shape: f32[16,8], index: 3, kind: input, shape index: {}]
  %s4 = inlined_call_operand.vmem [shape: f32[8,1], index: 4, kind: input, shape index: {}]
  %s5 = inlined_call_operand.vmem [shape: f32[2,256,128], index: 5, kind: output, shape index: {0}]
  %s6 = inlined_call_operand.vmem [shape: f32[2,8,256], index: 6, kind: output, shape index: {1}]
  %7 = xla_tuple %s5, %s6
  %s8 = sld [smem:[#allocation0]]
  $region69: #{primary_mat_caps.1} parent=0
    _
  %s10 = ssub.s32 1, %s8
  %s11 = scalar_select 0, %s10, %s8
  $region1: #{primary_mat_caps.1} parent=0
    #allocation2 [shape = 'u8[8192]{0}', space=vmem, size = 0x2000, scoped, tag = 'input window, operand 1, single buffered']
    #allocation3 [shape = 's32[2]{0}', space=sflag, size = 0x8, scoped, tag = 'scoped memory for primary_mat_caps.1']
    #allocation4 [shape = 'u8[512]{0}', space=vmem, size = 0x400, scoped, tag = 'input window, operand 2, single buffered']
    #allocation5 [shape = 's32[1]{0}', space=sflag, size = 0x4, scoped, tag = 'scoped memory for primary_mat_caps.1']
    %12 = vsyncpa [#allocation3], 0
    %13 = vsyncpa [#allocation5], 0
    loop: start=0, step=1, limit=4
    $region2: #{primary_mat_caps.1} parent=1 // loop_pre_header
      _
    $region3: #{primary_mat_caps.1} parent=1 // loop_header
      %s15 = sphi 0, %s19
      %p16 = scmp.ge.s32.totalorder %s15, 4
      %s22 = sphi 0, %s34
      %s23 = sphi 0, %s30
      %s24 = sphi 0, %s22
      %s25 = sphi 0, %s23
      %s26 = sphi 0, %s24
      %s27 = sphi 0, %s25
      %s39 = sphi 0, %s41
      %s42 = sphi 0, %s39
      %s43 = sphi 0, %s42
      %s59 = sphi 0, %s43
      %s63 = sphi 0, %s63
      %s65 = sphi 0, %s63
      %s66 = sphi 0, %s65
      %s80 = sphi 0, %s66
      %s84 = sphi 0, %s84
      %s86 = sphi 0, %s84
      %s87 = sphi 0, %s86
      %s101 = sphi 0, %s87
      %s105 = sphi 0, %s105
      %s107 = sphi 0, %s105
      %s108 = sphi 0, %s107
      %s122 = sphi 0, %s108
      %s126 = sphi 0, %s126
      %s128 = sphi 0, %s126
      %s129 = sphi 0, %s128
      %s143 = sphi 0, %s129
      %s151 = sphi 0, %s153
      %s154 = sphi 0, %s151
      %s155 = sphi 0, %s154
      %s171 = sphi 0, %s155
      %s179 = sphi 0, %s181
      %s182 = sphi 0, %s179
      %s183 = sphi 0, %s182
      %s199 = sphi 0, %s183
    $region4: #{primary_mat_caps.1} parent=1 // loop_header_branch
      %18 = sbr.rel (%p16) target = $region8
    $region5: #{primary_mat_caps.1} parent=1 // loop_body
      %s20 = ssub.s32 %s15, 1
      %s21 = ssub.s32 %s15, 2
      %s28 = sadd.s32 1, %s23
      %p29 = scmp.ge.s32.totalorder %s28, 1
      %s30 = scalar_select %p29, 0, %s28
      %s31 = sadd.s32 1, %s22
      %s32 = scalar_select %p29, %s31, %s22
      %p33 = scmp.ge.s32.totalorder %s32, 2
      %s34 = scalar_select %p33, 0, %s32
      %s35 = ssub.s32 %s22, %s34
      %s36 = ssub.s32 %s23, %s30
      %s37 = sor.u32 %s35, %s36
      %p38 = scmp.eq.s32.totalorder %s37, 0
      %s40 = sadd.s32 %s39, 1
      %s41 = scalar_select %p38, %s39, %s40
      %p44 = pneg %p38
      %p45 = scmp.eq.s32.totalorder %s15, 1
      %p46 = por %p44, %p45
      %p47 = scmp.ne.s32.totalorder %s39, %s42
      %p48 = scmp.eq.s32.totalorder %s15, 0
      %p49 = por %p47, %p48
      %p50 = scmp.ne.s32.totalorder %s39, %s42
      %p51 = scmp.eq.s32.totalorder %s20, 1
      %p52 = por %p50, %p51
      %p53 = scmp.ne.s32.totalorder %s42, %s43
      %p54 = scmp.eq.s32.totalorder %s20, 0
      %p55 = por %p53, %p54
      %p56 = scmp.ne.s32.totalorder %s42, %s43
      %p57 = scmp.eq.s32.totalorder %s21, 1
      %p58 = por %p56, %p57
      %p60 = scmp.ne.s32.totalorder %s43, %s59
      %p61 = scmp.eq.s32.totalorder %s21, 0
      %p62 = por %p60, %p61
      %s64 = sadd.s32 %s63, 1
      %p67 = scmp.eq.s32.totalorder %s15, 1
      %p68 = scmp.ne.s32.totalorder %s63, %s65
      %p69 = scmp.eq.s32.totalorder %s15, 0
      %p70 = por %p68, %p69
      %p71 = scmp.ne.s32.totalorder %s63, %s65
      %p72 = scmp.eq.s32.totalorder %s20, 1
      %p73 = por %p71, %p72
      %p74 = scmp.ne.s32.totalorder %s65, %s66
      %p75 = scmp.eq.s32.totalorder %s20, 0
      %p76 = por %p74, %p75
      %p77 = scmp.ne.s32.totalorder %s65, %s66
      %p78 = scmp.eq.s32.totalorder %s21, 1
      %p79 = por %p77, %p78
      %p81 = scmp.ne.s32.totalorder %s66, %s80
      %p82 = scmp.eq.s32.totalorder %s21, 0
      %p83 = por %p81, %p82
      %s85 = sadd.s32 %s84, 1
      %p88 = scmp.eq.s32.totalorder %s15, 1
      %p89 = scmp.ne.s32.totalorder %s84, %s86
      %p90 = scmp.eq.s32.totalorder %s15, 0
      %p91 = por %p89, %p90
      %p92 = scmp.ne.s32.totalorder %s84, %s86
      %p93 = scmp.eq.s32.totalorder %s20, 1
      %p94 = por %p92, %p93
      %p95 = scmp.ne.s32.totalorder %s86, %s87
      %p96 = scmp.eq.s32.totalorder %s20, 0
      %p97 = por %p95, %p96
      %p98 = scmp.ne.s32.totalorder %s86, %s87
      %p99 = scmp.eq.s32.totalorder %s21, 1
      %p100 = por %p98, %p99
      %p102 = scmp.ne.s32.totalorder %s87, %s101
      %p103 = scmp.eq.s32.totalorder %s21, 0
      %p104 = por %p102, %p103
      %s106 = sadd.s32 %s105, 1
      %p109 = scmp.eq.s32.totalorder %s15, 1
      %p110 = scmp.ne.s32.totalorder %s105, %s107
      %p111 = scmp.eq.s32.totalorder %s15, 0
      %p112 = por %p110, %p111
      %p113 = scmp.ne.s32.totalorder %s105, %s107
      %p114 = scmp.eq.s32.totalorder %s20, 1
      %p115 = por %p113, %p114
      %p116 = scmp.ne.s32.totalorder %s107, %s108
      %p117 = scmp.eq.s32.totalorder %s20, 0
      %p118 = por %p116, %p117
      %p119 = scmp.ne.s32.totalorder %s107, %s108
      %p120 = scmp.eq.s32.totalorder %s21, 1
      %p121 = por %p119, %p120
      %p123 = scmp.ne.s32.totalorder %s108, %s122
      %p124 = scmp.eq.s32.totalorder %s21, 0
      %p125 = por %p123, %p124
      %s127 = sadd.s32 %s126, 1
      %p130 = scmp.eq.s32.totalorder %s15, 1
      %p131 = scmp.ne.s32.totalorder %s126, %s128
      %p132 = scmp.eq.s32.totalorder %s15, 0
      %p133 = por %p131, %p132
      %p134 = scmp.ne.s32.totalorder %s126, %s128
      %p135 = scmp.eq.s32.totalorder %s20, 1
      %p136 = por %p134, %p135
      %p137 = scmp.ne.s32.totalorder %s128, %s129
      %p138 = scmp.eq.s32.totalorder %s20, 0
      %p139 = por %p137, %p138
      %p140 = scmp.ne.s32.totalorder %s128, %s129
      %p141 = scmp.eq.s32.totalorder %s21, 1
      %p142 = por %p140, %p141
      %p144 = scmp.ne.s32.totalorder %s129, %s143
      %p145 = scmp.eq.s32.totalorder %s21, 0
      %p146 = por %p144, %p145
      %s147 = ssub.s32 %s22, %s34
      %s148 = ssub.s32 %s23, %s30
      %s149 = sor.u32 %s147, %s148
      %p150 = scmp.eq.s32.totalorder %s149, 0
      %s152 = sadd.s32 %s151, 1
      %s153 = scalar_select %p150, %s151, %s152
      %p156 = pneg %p150
      %p157 = scmp.eq.s32.totalorder %s15, 1
      %p158 = por %p156, %p157
      %p159 = scmp.ne.s32.totalorder %s151, %s154
      %p160 = scmp.eq.s32.totalorder %s15, 0
      %p161 = por %p159, %p160
      %p162 = scmp.ne.s32.totalorder %s151, %s154
      %p163 = scmp.eq.s32.totalorder %s20, 1
      %p164 = por %p162, %p163
      %p165 = scmp.ne.s32.totalorder %s154, %s155
      %p166 = scmp.eq.s32.totalorder %s20, 0
      %p167 = por %p165, %p166
      %p168 = scmp.ne.s32.totalorder %s154, %s155
      %p169 = scmp.eq.s32.totalorder %s21, 1
      %p170 = por %p168, %p169
      %p172 = scmp.ne.s32.totalorder %s155, %s171
      %p173 = scmp.eq.s32.totalorder %s21, 0
      %p174 = por %p172, %p173
      %s175 = ssub.s32 %s22, %s34
      %s176 = ssub.s32 %s23, %s30
      %s177 = sor.u32 %s175, %s176
      %p178 = scmp.eq.s32.totalorder %s177, 0
      %s180 = sadd.s32 %s179, 1
      %s181 = scalar_select %p178, %s179, %s180
      %p184 = pneg %p178
      %p185 = scmp.eq.s32.totalorder %s15, 1
      %p186 = por %p184, %p185
      %p187 = scmp.ne.s32.totalorder %s179, %s182
      %p188 = scmp.eq.s32.totalorder %s15, 0
      %p189 = por %p187, %p188
      %p190 = scmp.ne.s32.totalorder %s179, %s182
      %p191 = scmp.eq.s32.totalorder %s20, 1
      %p192 = por %p190, %p191
      %p193 = scmp.ne.s32.totalorder %s182, %s183
      %p194 = scmp.eq.s32.totalorder %s20, 0
      %p195 = por %p193, %p194
      %p196 = scmp.ne.s32.totalorder %s182, %s183
      %p197 = scmp.eq.s32.totalorder %s21, 1
      %p198 = por %p196, %p197
      %p200 = scmp.ne.s32.totalorder %s183, %s199
      %p201 = scmp.eq.s32.totalorder %s21, 0
      %p202 = por %p200, %p201
      %p203 = scmp.le.s32.totalorder 1, %s15
      %p204 = scmp.lt.s32.totalorder %s15, 3
      %p205 = pnand %p203, %p204
      %p206 = pneg %p205
      // Predicated region
      $region9: #{primary_mat_caps.1} parent=5 // pred_check
        _
      $region10: #{primary_mat_caps.1} parent=5 // pred_check_branch
        %208 = sbr.rel (%p205) target = $region12
      $region11: #{primary_mat_caps.1} parent=5 // pred_region
        %s209 = ssub.s32 %s15, 1
        // Predicated region
        $region13: #{primary_mat_caps.1} parent=11 // pred_check
          %p210 = pneg %p76
        $region14: #{primary_mat_caps.1} parent=11 // pred_check_branch
          %212 = sbr.rel (%p210) target = $region16
        $region15: #{primary_mat_caps.1} parent=11 // pred_region
          %214 = vsyncadd [#allocation3], 0
          %s215 = sshll.u32 %s1, 4
          %s216 = int_to_ptr.hbm [resolvable:$true] %s215
          %s217 = sshll.u32 [#allocation2], 4
          %s218 = int_to_ptr.vmem [resolvable:$true] %s217
          %223 = dma.hbm_to_vmem [thread:$0]  %s216, 256, %s218, [#allocation3], 128, 128, 8
        $region16: #{primary_mat_caps.1} parent=11 // pred_fallthru
          _
        // Predicated region
        $region17: #{primary_mat_caps.1} parent=11 // pred_check
          %p224 = pneg %p97
        $region18: #{primary_mat_caps.1} parent=11 // pred_check_branch
          %226 = sbr.rel (%p224) target = $region20
        $region19: #{primary_mat_caps.1} parent=11 // pred_region
          %228 = vsyncadd [#allocation5], 0
          %s230 = sshll.u32 %s2, 4
          %s231 = int_to_ptr.hbm [resolvable:$true] %s230
          %s232 = sshll.u32 [#allocation4], 4
          %s233 = int_to_ptr.vmem [resolvable:$true] %s232
          %235 = dma.hbm_to_vmem [thread:$0]  %s231, 16, %s233, [#allocation5]
        $region20: #{primary_mat_caps.1} parent=11 // pred_fallthru
          _
        // Predicated region
        $region21: #{primary_mat_caps.1} parent=11 // pred_check
          %p236 = pneg %p118
        $region22: #{primary_mat_caps.1} parent=11 // pred_check_branch
          %238 = sbr.rel (%p236) target = $region24
        $region23: #{primary_mat_caps.1} parent=11 // pred_region
          _
        $region24: #{primary_mat_caps.1} parent=11 // pred_fallthru
          _
        // Predicated region
        $region25: #{primary_mat_caps.1} parent=11 // pred_check
          %p239 = pneg %p139
        $region26: #{primary_mat_caps.1} parent=11 // pred_check_branch
          %241 = sbr.rel (%p239) target = $region28
        $region27: #{primary_mat_caps.1} parent=11 // pred_region
          _
        $region28: #{primary_mat_caps.1} parent=11 // pred_fallthru
          _
      $region12: #{primary_mat_caps.1} parent=5 // pred_fallthru
        _
      %p242 = scmp.lt.s32.totalorder %s15, 2
      // Predicated region
      $region29: #{primary_mat_caps.1} parent=5 // pred_check
        %p243 = pneg %p242
      $region30: #{primary_mat_caps.1} parent=5 // pred_check_branch
        %245 = sbr.rel (%p243) target = $region32
      $region31: #{primary_mat_caps.1} parent=5 // pred_region
        // Predicated region
        $region33: #{primary_mat_caps.1} parent=31 // pred_check
          %p246 = pneg %p49
        $region34: #{primary_mat_caps.1} parent=31 // pred_check_branch
          %248 = sbr.rel (%p246) target = $region36
        $region35: #{primary_mat_caps.1} parent=31 // pred_region
          %s249 = smul.u32 2, %s23
          %p250 = scmp.lt.s32.totalorder %s22, 1
          %s251 = scalar_select %p250, %s22, 1
          %p252 = scmp.lt.s32.totalorder %s249, 1
          %s253 = scalar_select %p252, %s249, 1
          %s254 = smul.addr %s251, 4
          %s255 = sadd.s32 %s253, %s254
          %s256 = smul.addr %s255, 8
          %s257 = scalar_lea.vmem %s0, %s256
          %s258 = smul.u32 2, %s23
        $region36: #{primary_mat_caps.1} parent=31 // pred_fallthru
          _
      $region32: #{primary_mat_caps.1} parent=5 // pred_fallthru
        _
      %p259 = scmp.le.s32.totalorder 1, %s15
      %p260 = scmp.lt.s32.totalorder %s15, 3
      %p261 = pnand %p259, %p260
      %p262 = pneg %p261
      // Predicated region
      $region37: #{primary_mat_caps.1} parent=5 // pred_check
        _
      $region38: #{primary_mat_caps.1} parent=5 // pred_check_branch
        %264 = sbr.rel (%p261) target = $region40
      $region39: #{primary_mat_caps.1} parent=5 // pred_region
        %s265 = ssub.s32 %s15, 1
        // Predicated region
        $region41: #{primary_mat_caps.1} parent=39 // pred_check
          %p266 = pneg %p76
        $region42: #{primary_mat_caps.1} parent=39 // pred_check_branch
          %268 = sbr.rel (%p266) target = $region44
        $region43: #{primary_mat_caps.1} parent=39 // pred_region
          %270 = dma.done [#allocation3], 256
        $region44: #{primary_mat_caps.1} parent=39 // pred_fallthru
          _
        // Predicated region
        $region45: #{primary_mat_caps.1} parent=39 // pred_check
          %p271 = pneg %p97
        $region46: #{primary_mat_caps.1} parent=39 // pred_check_branch
          %273 = sbr.rel (%p271) target = $region48
        $region47: #{primary_mat_caps.1} parent=39 // pred_region
          %275 = dma.done [#allocation5], 16
        $region48: #{primary_mat_caps.1} parent=39 // pred_fallthru
          _
        %s276 = smul.u32 2, %s25
        %p277 = scmp.lt.s32.totalorder %s24, 1
        %s278 = scalar_select %p277, %s24, 1
        %p279 = scmp.lt.s32.totalorder %s276, 1
        %s280 = scalar_select %p279, %s276, 1
        %s281 = smul.addr %s278, 4
        %s282 = sadd.s32 %s280, %s281
        %s283 = smul.addr %s282, 8
        %s284 = scalar_lea.vmem %s0, %s283
        %p285 = pneg %p55
        %p286 = pneg %p52
        %p287 = pneg %p76
        %p288 = pneg %p73
        %p289 = pneg %p97
        %p290 = pneg %p94
        %p291 = pneg %p118
        %p292 = pneg %p115
        %p293 = pneg %p139
        %p294 = pneg %p136
        %p295 = pneg %p167
        %p296 = pneg %p164
        %s297 = smul.u32 32, %s25
        %p298 = scmp.lt.s32.totalorder %s24, 1
        %s299 = scalar_select %p298, %s24, 1
        %p300 = scmp.lt.s32.totalorder %s297, 31
        %s301 = scalar_select %p300, %s297, 31
        %s302 = smul.addr %s299, 32
        %s303 = sadd.s32 %s301, %s302
        %s304 = smul.addr %s303, 8
        %s305 = scalar_lea.vmem %s5, %s304
        %p306 = pneg %p195
        %p307 = pneg %p192
        %s308 = smul.u32 2, %s25
        %p309 = scmp.lt.s32.totalorder %s24, 1
        %s310 = scalar_select %p309, %s24, 1
        %p311 = scmp.lt.s32.totalorder %s308, 1
        %s312 = scalar_select %p311, %s308, 1
        %s313 = smul.addr %s310, 2
        %s314 = sadd.s32 %s312, %s313
        %s315 = smul.addr %s314, 8
        %s316 = scalar_lea.vmem %s6, %s315
        %s317 = smul.u32 2, %s25
        %p318 = scmp.lt.s32.totalorder %s24, 1
        %s319 = scalar_select %p318, %s24, 1
        %p320 = scmp.lt.s32.totalorder %s317, 1
        %s321 = scalar_select %p320, %s317, 1
        %s322 = smul.addr %s319, 4
        %s323 = sadd.s32 %s321, %s322
        %s324 = smul.addr %s323, 8
        %s325 = scalar_lea.vmem %s0, %s324
        %s326 = smul.u32 2, %s25
        %s327 = smul.u32 32, %s25
        %p328 = scmp.lt.s32.totalorder %s24, 1
        %s329 = scalar_select %p328, %s24, 1
        %p330 = scmp.lt.s32.totalorder %s327, 31
        %s331 = scalar_select %p330, %s327, 31
        %s332 = smul.addr %s329, 32
        %s333 = sadd.s32 %s331, %s332
        %s334 = smul.addr %s333, 8
        %s335 = scalar_lea.vmem %s5, %s334
        %s336 = smul.u32 32, %s25
        %s337 = smul.u32 2, %s25
        %p338 = scmp.lt.s32.totalorder %s24, 1
        %s339 = scalar_select %p338, %s24, 1
        %p340 = scmp.lt.s32.totalorder %s337, 1
        %s341 = scalar_select %p340, %s337, 1
        %s342 = smul.addr %s339, 2
        %s343 = sadd.s32 %s341, %s342
        %s344 = smul.addr %s343, 8
        %s345 = scalar_lea.vmem %s6, %s344
        %s346 = smul.u32 2, %s25
        %v347 = vld [vmem:[%s325] sm:$0xff]
        %v348 = vld [vmem:[%s325 + $0x8] sm:$0xff]
        %v349 = vld [vmem:[%s325 + $0x10] sm:$0xff]
        %v350 = vld [vmem:[%s325 + $0x18] sm:$0xff]
        %v351 = vld [vmem:[#allocation2] sm:$0xff]
        %v352 = vld [vmem:[#allocation2 + $0x8] sm:$0xff]
        %v353 = vld [vmem:[#allocation4] sm:$0x1]
        %v355 = vperm.slane %v353, 0
        %357 = vxpose.xlu0.b32.start [1/16] %v347, 128
        %358 = vxpose.xlu0.b32.cont [2/16] %v349, 128
        %359 = vxpose.xlu0.b32.cont [3/16] 0.0, 128
        %360 = vxpose.xlu0.b32.cont [4/16] 0.0, 128
        %361 = vxpose.xlu0.b32.cont [5/16] 0.0, 128
        %362 = vxpose.xlu0.b32.cont [6/16] 0.0, 128
        %363 = vxpose.xlu0.b32.cont [7/16] 0.0, 128
        %364 = vxpose.xlu0.b32.cont [8/16] 0.0, 128
        %365 = vxpose.xlu0.b32.cont [9/16] 0.0, 128
        %366 = vxpose.xlu0.b32.cont [10/16] 0.0, 128
        %367 = vxpose.xlu0.b32.cont [11/16] 0.0, 128
        %368 = vxpose.xlu0.b32.cont [12/16] 0.0, 128
        %369 = vxpose.xlu0.b32.cont [13/16] 0.0, 128
        %370 = vxpose.xlu0.b32.cont [14/16] 0.0, 128
        %371 = vxpose.xlu0.b32.cont [15/16] 0.0, 128
        %372 = vxpose.xlu0.b32.end [16/16] 0.0, 128
        %v373 = vpop.trf.xlu0
        %v374 = vpop.trf.xlu0
        %v375 = vpop.trf.xlu0
        %v376 = vpop.trf.xlu0
        %v377 = vpop.trf.xlu0
        %v378 = vpop.trf.xlu0
        %v379 = vpop.trf.xlu0
        %v380 = vpop.trf.xlu0
        %v381 = vpop.trf.xlu0
        %v382 = vpop.trf.xlu0
        %v383 = vpop.trf.xlu0
        %v384 = vpop.trf.xlu0
        %v385 = vpop.trf.xlu0
        %v386 = vpop.trf.xlu0
        %v387 = vpop.trf.xlu0
        %v388 = vpop.trf.xlu0
        %389 = vxpose.xlu0.b32.start [1/16] %v348, 128
        %390 = vxpose.xlu0.b32.cont [2/16] %v350, 128
        %391 = vxpose.xlu0.b32.cont [3/16] 0.0, 128
        %392 = vxpose.xlu0.b32.cont [4/16] 0.0, 128
        %393 = vxpose.xlu0.b32.cont [5/16] 0.0, 128
        %394 = vxpose.xlu0.b32.cont [6/16] 0.0, 128
        %395 = vxpose.xlu0.b32.cont [7/16] 0.0, 128
        %396 = vxpose.xlu0.b32.cont [8/16] 0.0, 128
        %397 = vxpose.xlu0.b32.cont [9/16] 0.0, 128
        %398 = vxpose.xlu0.b32.cont [10/16] 0.0, 128
        %399 = vxpose.xlu0.b32.cont [11/16] 0.0, 128
        %400 = vxpose.xlu0.b32.cont [12/16] 0.0, 128
        %401 = vxpose.xlu0.b32.cont [13/16] 0.0, 128
        %402 = vxpose.xlu0.b32.cont [14/16] 0.0, 128
        %403 = vxpose.xlu0.b32.cont [15/16] 0.0, 128
        %404 = vxpose.xlu0.b32.end [16/16] 0.0, 128
        %v405 = vpop.trf.xlu0
        %v406 = vpop.trf.xlu0
        %v407 = vpop.trf.xlu0
        %v408 = vpop.trf.xlu0
        %v409 = vpop.trf.xlu0
        %v410 = vpop.trf.xlu0
        %v411 = vpop.trf.xlu0
        %v412 = vpop.trf.xlu0
        %v413 = vpop.trf.xlu0
        %v414 = vpop.trf.xlu0
        %v415 = vpop.trf.xlu0
        %v416 = vpop.trf.xlu0
        %v417 = vpop.trf.xlu0
        %v418 = vpop.trf.xlu0
        %v419 = vpop.trf.xlu0
        %v420 = vpop.trf.xlu0
        %vm421 = vcmask 130048
        %v423 = vsel %vm421, %v373, 0
        %v426 = vsel %vm421, %v374, 0
        %v429 = vsel %vm421, %v375, 0
        %v432 = vsel %vm421, %v376, 0
        %v435 = vsel %vm421, %v377, 0
        %v438 = vsel %vm421, %v378, 0
        %v441 = vsel %vm421, %v379, 0
        %v444 = vsel %vm421, %v380, 0
        %v447 = vsel %vm421, %v381, 0
        %v450 = vsel %vm421, %v382, 0
        %v453 = vsel %vm421, %v383, 0
        %v456 = vsel %vm421, %v384, 0
        %v459 = vsel %vm421, %v385, 0
        %v462 = vsel %vm421, %v386, 0
        %v465 = vsel %vm421, %v387, 0
        %v468 = vsel %vm421, %v388, 0
        %v471 = vsel %vm421, %v405, 0
        %v474 = vsel %vm421, %v406, 0
        %v477 = vsel %vm421, %v407, 0
        %v480 = vsel %vm421, %v408, 0
        %v483 = vsel %vm421, %v409, 0
        %v486 = vsel %vm421, %v410, 0
        %v489 = vsel %vm421, %v411, 0
        %v492 = vsel %vm421, %v412, 0
        %v495 = vsel %vm421, %v413, 0
        %v498 = vsel %vm421, %v414, 0
        %v501 = vsel %vm421, %v415, 0
        %v504 = vsel %vm421, %v416, 0
        %v507 = vsel %vm421, %v417, 0
        %v510 = vsel %vm421, %v418, 0
        %v513 = vsel %vm421, %v419, 0
        %v516 = vsel %vm421, %v420, 0
        %518 = vmatpush.msra.mxu0 0.0
        %519 = vmatpush.msra.mxu0 0.0
        %520 = vmatpush.msra.mxu0 0.0
        %521 = vmatpush.msra.mxu0 0.0
        %522 = vmatpush.msra.mxu0 0.0
        %523 = vmatpush.msra.mxu0 0.0
        %524 = vmatpush.msra.mxu0 0.0
        %525 = vmatpush.msra.mxu0 0.0
        %526 = vmatpush.msra.mxu0 0.0
        %527 = vmatpush.msra.mxu0 0.0
        %528 = vmatpush.msra.mxu0 0.0
        %529 = vmatpush.msra.mxu0 0.0
        %530 = vmatpush.msra.mxu0 0.0
        %531 = vmatpush.msra.mxu0 0.0
        %v532 = vand.u32 %v352, 4294901760
        %533 = vmatpush.msra.mxu0 %v532
        %v534 = vand.u32 %v351, 4294901760
        %535 = vmatpush.msra.mxu0 %v534
        %v536 = vand.u32 %v423, 4294901760
        %v537 = vsub.f32 %v423, %v536
        %v538 = vand.u32 %v537, 4294901760
        %v539 = vsub.f32 %v537, %v538
        %v540 = vand.u32 %v539, 4294901760
        %541 = vmatmul.f32.gmra.mxu0 %v540
        %v542 = vpop.f32.mrf.mxu0
        %v543 = vadd.f32 %v355, %v542
        %v544 = vand.u32 %v426, 4294901760
        %v545 = vsub.f32 %v426, %v544
        %v546 = vand.u32 %v545, 4294901760
        %v547 = vsub.f32 %v545, %v546
        %v548 = vand.u32 %v547, 4294901760
        %549 = vmatmul.f32.gmra.mxu0 %v548
        %v550 = vpop.f32.mrf.mxu0
        %v551 = vadd.f32 %v355, %v550
        %v552 = vand.u32 %v429, 4294901760
        %v553 = vsub.f32 %v429, %v552
        %v554 = vand.u32 %v553, 4294901760
        %v555 = vsub.f32 %v553, %v554
        %v556 = vand.u32 %v555, 4294901760
        %557 = vmatmul.f32.gmra.mxu0 %v556
        %v558 = vpop.f32.mrf.mxu0
        %v559 = vadd.f32 %v355, %v558
        %v560 = vand.u32 %v432, 4294901760
        %v561 = vsub.f32 %v432, %v560
        %v562 = vand.u32 %v561, 4294901760
        %v563 = vsub.f32 %v561, %v562
        %v564 = vand.u32 %v563, 4294901760
        %565 = vmatmul.f32.gmra.mxu0 %v564
        %v566 = vpop.f32.mrf.mxu0
        %v567 = vadd.f32 %v355, %v566
        %v568 = vand.u32 %v435, 4294901760
        %v569 = vsub.f32 %v435, %v568
        %v570 = vand.u32 %v569, 4294901760
        %v571 = vsub.f32 %v569, %v570
        %v572 = vand.u32 %v571, 4294901760
        %573 = vmatmul.f32.gmra.mxu0 %v572
        %v574 = vpop.f32.mrf.mxu0
        %v575 = vadd.f32 %v355, %v574
        %v576 = vand.u32 %v438, 4294901760
        %v577 = vsub.f32 %v438, %v576
        %v578 = vand.u32 %v577, 4294901760
        %v579 = vsub.f32 %v577, %v578
        %v580 = vand.u32 %v579, 4294901760
        %581 = vmatmul.f32.gmra.mxu0 %v580
        %v582 = vpop.f32.mrf.mxu0
        %v583 = vadd.f32 %v355, %v582
        %v584 = vand.u32 %v441, 4294901760
        %v585 = vsub.f32 %v441, %v584
        %v586 = vand.u32 %v585, 4294901760
        %v587 = vsub.f32 %v585, %v586
        %v588 = vand.u32 %v587, 4294901760
        %589 = vmatmul.f32.gmra.mxu0 %v588
        %v590 = vpop.f32.mrf.mxu0
        %v591 = vadd.f32 %v355, %v590
        %v592 = vand.u32 %v444, 4294901760
        %v593 = vsub.f32 %v444, %v592
        %v594 = vand.u32 %v593, 4294901760
        %v595 = vsub.f32 %v593, %v594
        %v596 = vand.u32 %v595, 4294901760
        %597 = vmatmul.f32.gmra.mxu0 %v596
        %v598 = vpop.f32.mrf.mxu0
        %v599 = vadd.f32 %v355, %v598
        %v600 = vand.u32 %v447, 4294901760
        %v601 = vsub.f32 %v447, %v600
        %v602 = vand.u32 %v601, 4294901760
        %v603 = vsub.f32 %v601, %v602
        %v604 = vand.u32 %v603, 4294901760
        %605 = vmatmul.f32.gmra.mxu0 %v604
        %v606 = vpop.f32.mrf.mxu0
        %v607 = vadd.f32 %v355, %v606
        %v608 = vand.u32 %v450, 4294901760
        %v609 = vsub.f32 %v450, %v608
        %v610 = vand.u32 %v609, 4294901760
        %v611 = vsub.f32 %v609, %v610
        %v612 = vand.u32 %v611, 4294901760
        %613 = vmatmul.f32.gmra.mxu0 %v612
        %v614 = vpop.f32.mrf.mxu0
        %v615 = vadd.f32 %v355, %v614
        %v616 = vand.u32 %v453, 4294901760
        %v617 = vsub.f32 %v453, %v616
        %v618 = vand.u32 %v617, 4294901760
        %v619 = vsub.f32 %v617, %v618
        %v620 = vand.u32 %v619, 4294901760
        %621 = vmatmul.f32.gmra.mxu0 %v620
        %v622 = vpop.f32.mrf.mxu0
        %v623 = vadd.f32 %v355, %v622
        %v624 = vand.u32 %v456, 4294901760
        %v625 = vsub.f32 %v456, %v624
        %v626 = vand.u32 %v625, 4294901760
        %v627 = vsub.f32 %v625, %v626
        %v628 = vand.u32 %v627, 4294901760
        %629 = vmatmul.f32.gmra.mxu0 %v628
        %v630 = vpop.f32.mrf.mxu0
        %v631 = vadd.f32 %v355, %v630
        %v632 = vand.u32 %v459, 4294901760
        %v633 = vsub.f32 %v459, %v632
        %v634 = vand.u32 %v633, 4294901760
        %v635 = vsub.f32 %v633, %v634
        %v636 = vand.u32 %v635, 4294901760
        %637 = vmatmul.f32.gmra.mxu0 %v636
        %v638 = vpop.f32.mrf.mxu0
        %v639 = vadd.f32 %v355, %v638
        %v640 = vand.u32 %v462, 4294901760
        %v641 = vsub.f32 %v462, %v640
        %v642 = vand.u32 %v641, 4294901760
        %v643 = vsub.f32 %v641, %v642
        %v644 = vand.u32 %v643, 4294901760
        %645 = vmatmul.f32.gmra.mxu0 %v644
        %v646 = vpop.f32.mrf.mxu0
        %v647 = vadd.f32 %v355, %v646
        %v648 = vand.u32 %v465, 4294901760
        %v649 = vsub.f32 %v465, %v648
        %v650 = vand.u32 %v649, 4294901760
        %v651 = vsub.f32 %v649, %v650
        %v652 = vand.u32 %v651, 4294901760
        %653 = vmatmul.f32.gmra.mxu0 %v652
        %v654 = vpop.f32.mrf.mxu0
        %v655 = vadd.f32 %v355, %v654
        %v656 = vand.u32 %v468, 4294901760
        %v657 = vsub.f32 %v468, %v656
        %v658 = vand.u32 %v657, 4294901760
        %v659 = vsub.f32 %v657, %v658
        %v660 = vand.u32 %v659, 4294901760
        %661 = vmatmul.f32.gmra.mxu0 %v660
        %v662 = vpop.f32.mrf.mxu0
        %v663 = vadd.f32 %v355, %v662
        %v664 = vand.u32 %v471, 4294901760
        %v665 = vsub.f32 %v471, %v664
        %v666 = vand.u32 %v665, 4294901760
        %v667 = vsub.f32 %v665, %v666
        %v668 = vand.u32 %v667, 4294901760
        %669 = vmatmul.f32.gmra.mxu0 %v668
        %v670 = vpop.f32.mrf.mxu0
        %v671 = vadd.f32 %v355, %v670
        %v672 = vand.u32 %v474, 4294901760
        %v673 = vsub.f32 %v474, %v672
        %v674 = vand.u32 %v673, 4294901760
        %v675 = vsub.f32 %v673, %v674
        %v676 = vand.u32 %v675, 4294901760
        %677 = vmatmul.f32.gmra.mxu0 %v676
        %v678 = vpop.f32.mrf.mxu0
        %v679 = vadd.f32 %v355, %v678
        %v680 = vand.u32 %v477, 4294901760
        %v681 = vsub.f32 %v477, %v680
        %v682 = vand.u32 %v681, 4294901760
        %v683 = vsub.f32 %v681, %v682
        %v684 = vand.u32 %v683, 4294901760
        %685 = vmatmul.f32.gmra.mxu0 %v684
        %v686 = vpop.f32.mrf.mxu0
        %v687 = vadd.f32 %v355, %v686
        %v688 = vand.u32 %v480, 4294901760
        %v689 = vsub.f32 %v480, %v688
        %v690 = vand.u32 %v689, 4294901760
        %v691 = vsub.f32 %v689, %v690
        %v692 = vand.u32 %v691, 4294901760
        %693 = vmatmul.f32.gmra.mxu0 %v692
        %v694 = vpop.f32.mrf.mxu0
        %v695 = vadd.f32 %v355, %v694
        %v696 = vand.u32 %v483, 4294901760
        %v697 = vsub.f32 %v483, %v696
        %v698 = vand.u32 %v697, 4294901760
        %v699 = vsub.f32 %v697, %v698
        %v700 = vand.u32 %v699, 4294901760
        %701 = vmatmul.f32.gmra.mxu0 %v700
        %v702 = vpop.f32.mrf.mxu0
        %v703 = vadd.f32 %v355, %v702
        %v704 = vand.u32 %v486, 4294901760
        %v705 = vsub.f32 %v486, %v704
        %v706 = vand.u32 %v705, 4294901760
        %v707 = vsub.f32 %v705, %v706
        %v708 = vand.u32 %v707, 4294901760
        %709 = vmatmul.f32.gmra.mxu0 %v708
        %v710 = vpop.f32.mrf.mxu0
        %v711 = vadd.f32 %v355, %v710
        %v712 = vand.u32 %v489, 4294901760
        %v713 = vsub.f32 %v489, %v712
        %v714 = vand.u32 %v713, 4294901760
        %v715 = vsub.f32 %v713, %v714
        %v716 = vand.u32 %v715, 4294901760
        %717 = vmatmul.f32.gmra.mxu0 %v716
        %v718 = vpop.f32.mrf.mxu0
        %v719 = vadd.f32 %v355, %v718
        %v720 = vand.u32 %v492, 4294901760
        %v721 = vsub.f32 %v492, %v720
        %v722 = vand.u32 %v721, 4294901760
        %v723 = vsub.f32 %v721, %v722
        %v724 = vand.u32 %v723, 4294901760
        %725 = vmatmul.f32.gmra.mxu0 %v724
        %v726 = vpop.f32.mrf.mxu0
        %v727 = vadd.f32 %v355, %v726
        %v728 = vand.u32 %v495, 4294901760
        %v729 = vsub.f32 %v495, %v728
        %v730 = vand.u32 %v729, 4294901760
        %v731 = vsub.f32 %v729, %v730
        %v732 = vand.u32 %v731, 4294901760
        %733 = vmatmul.f32.gmra.mxu0 %v732
        %v734 = vpop.f32.mrf.mxu0
        %v735 = vadd.f32 %v355, %v734
        %v736 = vand.u32 %v498, 4294901760
        %v737 = vsub.f32 %v498, %v736
        %v738 = vand.u32 %v737, 4294901760
        %v739 = vsub.f32 %v737, %v738
        %v740 = vand.u32 %v739, 4294901760
        %741 = vmatmul.f32.gmra.mxu0 %v740
        %v742 = vpop.f32.mrf.mxu0
        %v743 = vadd.f32 %v355, %v742
        %v744 = vand.u32 %v501, 4294901760
        %v745 = vsub.f32 %v501, %v744
        %v746 = vand.u32 %v745, 4294901760
        %v747 = vsub.f32 %v745, %v746
        %v748 = vand.u32 %v747, 4294901760
        %749 = vmatmul.f32.gmra.mxu0 %v748
        %v750 = vpop.f32.mrf.mxu0
        %v751 = vadd.f32 %v355, %v750
        %v752 = vand.u32 %v504, 4294901760
        %v753 = vsub.f32 %v504, %v752
        %v754 = vand.u32 %v753, 4294901760
        %v755 = vsub.f32 %v753, %v754
        %v756 = vand.u32 %v755, 4294901760
        %757 = vmatmul.f32.gmra.mxu0 %v756
        %v758 = vpop.f32.mrf.mxu0
        %v759 = vadd.f32 %v355, %v758
        %v760 = vand.u32 %v507, 4294901760
        %v761 = vsub.f32 %v507, %v760
        %v762 = vand.u32 %v761, 4294901760
        %v763 = vsub.f32 %v761, %v762
        %v764 = vand.u32 %v763, 4294901760
        %765 = vmatmul.f32.gmra.mxu0 %v764
        %v766 = vpop.f32.mrf.mxu0
        %v767 = vadd.f32 %v355, %v766
        %v768 = vand.u32 %v510, 4294901760
        %v769 = vsub.f32 %v510, %v768
        %v770 = vand.u32 %v769, 4294901760
        %v771 = vsub.f32 %v769, %v770
        %v772 = vand.u32 %v771, 4294901760
        %773 = vmatmul.f32.gmra.mxu0 %v772
        %v774 = vpop.f32.mrf.mxu0
        %v775 = vadd.f32 %v355, %v774
        %v776 = vand.u32 %v513, 4294901760
        %v777 = vsub.f32 %v513, %v776
        %v778 = vand.u32 %v777, 4294901760
        %v779 = vsub.f32 %v777, %v778
        %v780 = vand.u32 %v779, 4294901760
        %781 = vmatmul.f32.gmra.mxu0 %v780
        %v782 = vpop.f32.mrf.mxu0
        %v783 = vadd.f32 %v355, %v782
        %v784 = vand.u32 %v516, 4294901760
        %v785 = vsub.f32 %v516, %v784
        %v786 = vand.u32 %v785, 4294901760
        %v787 = vsub.f32 %v785, %v786
        %v788 = vand.u32 %v787, 4294901760
        %789 = vmatmul.f32.gmra.mxu0 %v788
        %v790 = vpop.f32.mrf.mxu0
        %v791 = vadd.f32 %v355, %v790
        %792 = vdwg.mxu0
        %793 = vmatpush.msra.mxu0 0.0
        %794 = vmatpush.msra.mxu0 0.0
        %795 = vmatpush.msra.mxu0 0.0
        %796 = vmatpush.msra.mxu0 0.0
        %797 = vmatpush.msra.mxu0 0.0
        %798 = vmatpush.msra.mxu0 0.0
        %799 = vmatpush.msra.mxu0 0.0
        %800 = vmatpush.msra.mxu0 0.0
        %801 = vmatpush.msra.mxu0 0.0
        %802 = vmatpush.msra.mxu0 0.0
        %803 = vmatpush.msra.mxu0 0.0
        %804 = vmatpush.msra.mxu0 0.0
        %805 = vmatpush.msra.mxu0 0.0
        %806 = vmatpush.msra.mxu0 0.0
        %v807 = vand.u32 %v352, 4294901760
        %v808 = vsub.f32 %v352, %v807
        %v809 = vand.u32 %v808, 4294901760
        %v810 = vsub.f32 %v808, %v809
        %v811 = vand.u32 %v810, 4294901760
        %812 = vmatpush.msra.mxu0 %v811
        %v813 = vand.u32 %v351, 4294901760
        %v814 = vsub.f32 %v351, %v813
        %v815 = vand.u32 %v814, 4294901760
        %v816 = vsub.f32 %v814, %v815
        %v817 = vand.u32 %v816, 4294901760
        %818 = vmatpush.msra.mxu0 %v817
        %v819 = vand.u32 %v423, 4294901760
        %820 = vmatmul.f32.gmra.mxu0 %v819
        %v821 = vpop.f32.mrf.mxu0
        %v822 = vadd.f32 %v543, %v821
        %v823 = vand.u32 %v426, 4294901760
        %824 = vmatmul.f32.gmra.mxu0 %v823
        %v825 = vpop.f32.mrf.mxu0
        %v826 = vadd.f32 %v551, %v825
        %v827 = vand.u32 %v429, 4294901760
        %828 = vmatmul.f32.gmra.mxu0 %v827
        %v829 = vpop.f32.mrf.mxu0
        %v830 = vadd.f32 %v559, %v829
        %v831 = vand.u32 %v432, 4294901760
        %832 = vmatmul.f32.gmra.mxu0 %v831
        %v833 = vpop.f32.mrf.mxu0
        %v834 = vadd.f32 %v567, %v833
        %v835 = vand.u32 %v435, 4294901760
        %836 = vmatmul.f32.gmra.mxu0 %v835
        %v837 = vpop.f32.mrf.mxu0
        %v838 = vadd.f32 %v575, %v837
        %v839 = vand.u32 %v438, 4294901760
        %840 = vmatmul.f32.gmra.mxu0 %v839
        %v841 = vpop.f32.mrf.mxu0
        %v842 = vadd.f32 %v583, %v841
        %v843 = vand.u32 %v441, 4294901760
        %844 = vmatmul.f32.gmra.mxu0 %v843
        %v845 = vpop.f32.mrf.mxu0
        %v846 = vadd.f32 %v591, %v845
        %v847 = vand.u32 %v444, 4294901760
        %848 = vmatmul.f32.gmra.mxu0 %v847
        %v849 = vpop.f32.mrf.mxu0
        %v850 = vadd.f32 %v599, %v849
        %v851 = vand.u32 %v447, 4294901760
        %852 = vmatmul.f32.gmra.mxu0 %v851
        %v853 = vpop.f32.mrf.mxu0
        %v854 = vadd.f32 %v607, %v853
        %v855 = vand.u32 %v450, 4294901760
        %856 = vmatmul.f32.gmra.mxu0 %v855
        %v857 = vpop.f32.mrf.mxu0
        %v858 = vadd.f32 %v615, %v857
        %v859 = vand.u32 %v453, 4294901760
        %860 = vmatmul.f32.gmra.mxu0 %v859
        %v861 = vpop.f32.mrf.mxu0
        %v862 = vadd.f32 %v623, %v861
        %v863 = vand.u32 %v456, 4294901760
        %864 = vmatmul.f32.gmra.mxu0 %v863
        %v865 = vpop.f32.mrf.mxu0
        %v866 = vadd.f32 %v631, %v865
        %v867 = vand.u32 %v459, 4294901760
        %868 = vmatmul.f32.gmra.mxu0 %v867
        %v869 = vpop.f32.mrf.mxu0
        %v870 = vadd.f32 %v639, %v869
        %v871 = vand.u32 %v462, 4294901760
        %872 = vmatmul.f32.gmra.mxu0 %v871
        %v873 = vpop.f32.mrf.mxu0
        %v874 = vadd.f32 %v647, %v873
        %v875 = vand.u32 %v465, 4294901760
        %876 = vmatmul.f32.gmra.mxu0 %v875
        %v877 = vpop.f32.mrf.mxu0
        %v878 = vadd.f32 %v655, %v877
        %v879 = vand.u32 %v468, 4294901760
        %880 = vmatmul.f32.gmra.mxu0 %v879
        %v881 = vpop.f32.mrf.mxu0
        %v882 = vadd.f32 %v663, %v881
        %v883 = vand.u32 %v471, 4294901760
        %884 = vmatmul.f32.gmra.mxu0 %v883
        %v885 = vpop.f32.mrf.mxu0
        %v886 = vadd.f32 %v671, %v885
        %v887 = vand.u32 %v474, 4294901760
        %888 = vmatmul.f32.gmra.mxu0 %v887
        %v889 = vpop.f32.mrf.mxu0
        %v890 = vadd.f32 %v679, %v889
        %v891 = vand.u32 %v477, 4294901760
        %892 = vmatmul.f32.gmra.mxu0 %v891
        %v893 = vpop.f32.mrf.mxu0
        %v894 = vadd.f32 %v687, %v893
        %v895 = vand.u32 %v480, 4294901760
        %896 = vmatmul.f32.gmra.mxu0 %v895
        %v897 = vpop.f32.mrf.mxu0
        %v898 = vadd.f32 %v695, %v897
        %v899 = vand.u32 %v483, 4294901760
        %900 = vmatmul.f32.gmra.mxu0 %v899
        %v901 = vpop.f32.mrf.mxu0
        %v902 = vadd.f32 %v703, %v901
        %v903 = vand.u32 %v486, 4294901760
        %904 = vmatmul.f32.gmra.mxu0 %v903
        %v905 = vpop.f32.mrf.mxu0
        %v906 = vadd.f32 %v711, %v905
        %v907 = vand.u32 %v489, 4294901760
        %908 = vmatmul.f32.gmra.mxu0 %v907
        %v909 = vpop.f32.mrf.mxu0
        %v910 = vadd.f32 %v719, %v909
        %v911 = vand.u32 %v492, 4294901760
        %912 = vmatmul.f32.gmra.mxu0 %v911
        %v913 = vpop.f32.mrf.mxu0
        %v914 = vadd.f32 %v727, %v913
        %v915 = vand.u32 %v495, 4294901760
        %916 = vmatmul.f32.gmra.mxu0 %v915
        %v917 = vpop.f32.mrf.mxu0
        %v918 = vadd.f32 %v735, %v917
        %v919 = vand.u32 %v498, 4294901760
        %920 = vmatmul.f32.gmra.mxu0 %v919
        %v921 = vpop.f32.mrf.mxu0
        %v922 = vadd.f32 %v743, %v921
        %v923 = vand.u32 %v501, 4294901760
        %924 = vmatmul.f32.gmra.mxu0 %v923
        %v925 = vpop.f32.mrf.mxu0
        %v926 = vadd.f32 %v751, %v925
        %v927 = vand.u32 %v504, 4294901760
        %928 = vmatmul.f32.gmra.mxu0 %v927
        %v929 = vpop.f32.mrf.mxu0
        %v930 = vadd.f32 %v759, %v929
        %v931 = vand.u32 %v507, 4294901760
        %932 = vmatmul.f32.gmra.mxu0 %v931
        %v933 = vpop.f32.mrf.mxu0
        %v934 = vadd.f32 %v767, %v933
        %v935 = vand.u32 %v510, 4294901760
        %936 = vmatmul.f32.gmra.mxu0 %v935
        %v937 = vpop.f32.mrf.mxu0
        %v938 = vadd.f32 %v775, %v937
        %v939 = vand.u32 %v513, 4294901760
        %940 = vmatmul.f32.gmra.mxu0 %v939
        %v941 = vpop.f32.mrf.mxu0
        %v942 = vadd.f32 %v783, %v941
        %v943 = vand.u32 %v516, 4294901760
        %944 = vmatmul.f32.gmra.mxu0 %v943
        %v945 = vpop.f32.mrf.mxu0
        %v946 = vadd.f32 %v791, %v945
        %947 = vdwg.mxu0
        %948 = vmatpush.msra.mxu0 0.0
        %949 = vmatpush.msra.mxu0 0.0
        %950 = vmatpush.msra.mxu0 0.0
        %951 = vmatpush.msra.mxu0 0.0
        %952 = vmatpush.msra.mxu0 0.0
        %953 = vmatpush.msra.mxu0 0.0
        %954 = vmatpush.msra.mxu0 0.0
        %955 = vmatpush.msra.mxu0 0.0
        %956 = vmatpush.msra.mxu0 0.0
        %957 = vmatpush.msra.mxu0 0.0
        %958 = vmatpush.msra.mxu0 0.0
        %959 = vmatpush.msra.mxu0 0.0
        %960 = vmatpush.msra.mxu0 0.0
        %961 = vmatpush.msra.mxu0 0.0
        %v962 = vand.u32 %v352, 4294901760
        %v963 = vsub.f32 %v352, %v962
        %964 = vmatpush.msra.mxu0 %v963
        %v965 = vand.u32 %v351, 4294901760
        %v966 = vsub.f32 %v351, %v965
        %967 = vmatpush.msra.mxu0 %v966
        %v968 = vand.u32 %v423, 4294901760
        %v969 = vsub.f32 %v423, %v968
        %970 = vmatmul.f32.gmra.mxu0 %v969
        %v971 = vpop.f32.mrf.mxu0
        %v972 = vadd.f32 %v822, %v971
        %v973 = vand.u32 %v426, 4294901760
        %v974 = vsub.f32 %v426, %v973
        %975 = vmatmul.f32.gmra.mxu0 %v974
        %v976 = vpop.f32.mrf.mxu0
        %v977 = vadd.f32 %v826, %v976
        %v978 = vand.u32 %v429, 4294901760
        %v979 = vsub.f32 %v429, %v978
        %980 = vmatmul.f32.gmra.mxu0 %v979
        %v981 = vpop.f32.mrf.mxu0
        %v982 = vadd.f32 %v830, %v981
        %v983 = vand.u32 %v432, 4294901760
        %v984 = vsub.f32 %v432, %v983
        %985 = vmatmul.f32.gmra.mxu0 %v984
        %v986 = vpop.f32.mrf.mxu0
        %v987 = vadd.f32 %v834, %v986
        %v988 = vand.u32 %v435, 4294901760
        %v989 = vsub.f32 %v435, %v988
        %990 = vmatmul.f32.gmra.mxu0 %v989
        %v991 = vpop.f32.mrf.mxu0
        %v992 = vadd.f32 %v838, %v991
        %v993 = vand.u32 %v438, 4294901760
        %v994 = vsub.f32 %v438, %v993
        %995 = vmatmul.f32.gmra.mxu0 %v994
        %v996 = vpop.f32.mrf.mxu0
        %v997 = vadd.f32 %v842, %v996
        %v998 = vand.u32 %v441, 4294901760
        %v999 = vsub.f32 %v441, %v998
        %1000 = vmatmul.f32.gmra.mxu0 %v999
        %v1001 = vpop.f32.mrf.mxu0
        %v1002 = vadd.f32 %v846, %v1001
        %v1003 = vand.u32 %v444, 4294901760
        %v1004 = vsub.f32 %v444, %v1003
        %1005 = vmatmul.f32.gmra.mxu0 %v1004
        %v1006 = vpop.f32.mrf.mxu0
        %v1007 = vadd.f32 %v850, %v1006
        %v1008 = vand.u32 %v447, 4294901760
        %v1009 = vsub.f32 %v447, %v1008
        %1010 = vmatmul.f32.gmra.mxu0 %v1009
        %v1011 = vpop.f32.mrf.mxu0
        %v1012 = vadd.f32 %v854, %v1011
        %v1013 = vand.u32 %v450, 4294901760
        %v1014 = vsub.f32 %v450, %v1013
        %1015 = vmatmul.f32.gmra.mxu0 %v1014
        %v1016 = vpop.f32.mrf.mxu0
        %v1017 = vadd.f32 %v858, %v1016
        %v1018 = vand.u32 %v453, 4294901760
        %v1019 = vsub.f32 %v453, %v1018
        %1020 = vmatmul.f32.gmra.mxu0 %v1019
        %v1021 = vpop.f32.mrf.mxu0
        %v1022 = vadd.f32 %v862, %v1021
        %v1023 = vand.u32 %v456, 4294901760
        %v1024 = vsub.f32 %v456, %v1023
        %1025 = vmatmul.f32.gmra.mxu0 %v1024
        %v1026 = vpop.f32.mrf.mxu0
        %v1027 = vadd.f32 %v866, %v1026
        %v1028 = vand.u32 %v459, 4294901760
        %v1029 = vsub.f32 %v459, %v1028
        %1030 = vmatmul.f32.gmra.mxu0 %v1029
        %v1031 = vpop.f32.mrf.mxu0
        %v1032 = vadd.f32 %v870, %v1031
        %v1033 = vand.u32 %v462, 4294901760
        %v1034 = vsub.f32 %v462, %v1033
        %1035 = vmatmul.f32.gmra.mxu0 %v1034
        %v1036 = vpop.f32.mrf.mxu0
        %v1037 = vadd.f32 %v874, %v1036
        %v1038 = vand.u32 %v465, 4294901760
        %v1039 = vsub.f32 %v465, %v1038
        %1040 = vmatmul.f32.gmra.mxu0 %v1039
        %v1041 = vpop.f32.mrf.mxu0
        %v1042 = vadd.f32 %v878, %v1041
        %v1043 = vand.u32 %v468, 4294901760
        %v1044 = vsub.f32 %v468, %v1043
        %1045 = vmatmul.f32.gmra.mxu0 %v1044
        %v1046 = vpop.f32.mrf.mxu0
        %v1047 = vadd.f32 %v882, %v1046
        %v1048 = vand.u32 %v471, 4294901760
        %v1049 = vsub.f32 %v471, %v1048
        %1050 = vmatmul.f32.gmra.mxu0 %v1049
        %v1051 = vpop.f32.mrf.mxu0
        %v1052 = vadd.f32 %v886, %v1051
        %v1053 = vand.u32 %v474, 4294901760
        %v1054 = vsub.f32 %v474, %v1053
        %1055 = vmatmul.f32.gmra.mxu0 %v1054
        %v1056 = vpop.f32.mrf.mxu0
        %v1057 = vadd.f32 %v890, %v1056
        %v1058 = vand.u32 %v477, 4294901760
        %v1059 = vsub.f32 %v477, %v1058
        %1060 = vmatmul.f32.gmra.mxu0 %v1059
        %v1061 = vpop.f32.mrf.mxu0
        %v1062 = vadd.f32 %v894, %v1061
        %v1063 = vand.u32 %v480, 4294901760
        %v1064 = vsub.f32 %v480, %v1063
        %1065 = vmatmul.f32.gmra.mxu0 %v1064
        %v1066 = vpop.f32.mrf.mxu0
        %v1067 = vadd.f32 %v898, %v1066
        %v1068 = vand.u32 %v483, 4294901760
        %v1069 = vsub.f32 %v483, %v1068
        %1070 = vmatmul.f32.gmra.mxu0 %v1069
        %v1071 = vpop.f32.mrf.mxu0
        %v1072 = vadd.f32 %v902, %v1071
        %v1073 = vand.u32 %v486, 4294901760
        %v1074 = vsub.f32 %v486, %v1073
        %1075 = vmatmul.f32.gmra.mxu0 %v1074
        %v1076 = vpop.f32.mrf.mxu0
        %v1077 = vadd.f32 %v906, %v1076
        %v1078 = vand.u32 %v489, 4294901760
        %v1079 = vsub.f32 %v489, %v1078
        %1080 = vmatmul.f32.gmra.mxu0 %v1079
        %v1081 = vpop.f32.mrf.mxu0
        %v1082 = vadd.f32 %v910, %v1081
        %v1083 = vand.u32 %v492, 4294901760
        %v1084 = vsub.f32 %v492, %v1083
        %1085 = vmatmul.f32.gmra.mxu0 %v1084
        %v1086 = vpop.f32.mrf.mxu0
        %v1087 = vadd.f32 %v914, %v1086
        %v1088 = vand.u32 %v495, 4294901760
        %v1089 = vsub.f32 %v495, %v1088
        %1090 = vmatmul.f32.gmra.mxu0 %v1089
        %v1091 = vpop.f32.mrf.mxu0
        %v1092 = vadd.f32 %v918, %v1091
        %v1093 = vand.u32 %v498, 4294901760
        %v1094 = vsub.f32 %v498, %v1093
        %1095 = vmatmul.f32.gmra.mxu0 %v1094
        %v1096 = vpop.f32.mrf.mxu0
        %v1097 = vadd.f32 %v922, %v1096
        %v1098 = vand.u32 %v501, 4294901760
        %v1099 = vsub.f32 %v501, %v1098
        %1100 = vmatmul.f32.gmra.mxu0 %v1099
        %v1101 = vpop.f32.mrf.mxu0
        %v1102 = vadd.f32 %v926, %v1101
        %v1103 = vand.u32 %v504, 4294901760
        %v1104 = vsub.f32 %v504, %v1103
        %1105 = vmatmul.f32.gmra.mxu0 %v1104
        %v1106 = vpop.f32.mrf.mxu0
        %v1107 = vadd.f32 %v930, %v1106
        %v1108 = vand.u32 %v507, 4294901760
        %v1109 = vsub.f32 %v507, %v1108
        %1110 = vmatmul.f32.gmra.mxu0 %v1109
        %v1111 = vpop.f32.mrf.mxu0
        %v1112 = vadd.f32 %v934, %v1111
        %v1113 = vand.u32 %v510, 4294901760
        %v1114 = vsub.f32 %v510, %v1113
        %1115 = vmatmul.f32.gmra.mxu0 %v1114
        %v1116 = vpop.f32.mrf.mxu0
        %v1117 = vadd.f32 %v938, %v1116
        %v1118 = vand.u32 %v513, 4294901760
        %v1119 = vsub.f32 %v513, %v1118
        %1120 = vmatmul.f32.gmra.mxu0 %v1119
        %v1121 = vpop.f32.mrf.mxu0
        %v1122 = vadd.f32 %v942, %v1121
        %v1123 = vand.u32 %v516, 4294901760
        %v1124 = vsub.f32 %v516, %v1123
        %1125 = vmatmul.f32.gmra.mxu0 %v1124
        %v1126 = vpop.f32.mrf.mxu0
        %v1127 = vadd.f32 %v946, %v1126
        %1128 = vdwg.mxu0
        %1129 = vmatpush.msra.mxu0 0.0
        %1130 = vmatpush.msra.mxu0 0.0
        %1131 = vmatpush.msra.mxu0 0.0
        %1132 = vmatpush.msra.mxu0 0.0
        %1133 = vmatpush.msra.mxu0 0.0
        %1134 = vmatpush.msra.mxu0 0.0
        %1135 = vmatpush.msra.mxu0 0.0
        %1136 = vmatpush.msra.mxu0 0.0
        %1137 = vmatpush.msra.mxu0 0.0
        %1138 = vmatpush.msra.mxu0 0.0
        %1139 = vmatpush.msra.mxu0 0.0
        %1140 = vmatpush.msra.mxu0 0.0
        %1141 = vmatpush.msra.mxu0 0.0
        %1142 = vmatpush.msra.mxu0 0.0
        %v1143 = vand.u32 %v352, 4294901760
        %1144 = vmatpush.msra.mxu0 %v1143
        %v1145 = vand.u32 %v351, 4294901760
        %1146 = vmatpush.msra.mxu0 %v1145
        %v1147 = vand.u32 %v423, 4294901760
        %v1148 = vsub.f32 %v423, %v1147
        %v1149 = vand.u32 %v1148, 4294901760
        %1150 = vmatmul.f32.gmra.mxu0 %v1149
        %v1151 = vpop.f32.mrf.mxu0
        %v1152 = vadd.f32 %v972, %v1151
        %v1153 = vand.u32 %v426, 4294901760
        %v1154 = vsub.f32 %v426, %v1153
        %v1155 = vand.u32 %v1154, 4294901760
        %1156 = vmatmul.f32.gmra.mxu0 %v1155
        %v1157 = vpop.f32.mrf.mxu0
        %v1158 = vadd.f32 %v977, %v1157
        %v1159 = vand.u32 %v429, 4294901760
        %v1160 = vsub.f32 %v429, %v1159
        %v1161 = vand.u32 %v1160, 4294901760
        %1162 = vmatmul.f32.gmra.mxu0 %v1161
        %v1163 = vpop.f32.mrf.mxu0
        %v1164 = vadd.f32 %v982, %v1163
        %v1165 = vand.u32 %v432, 4294901760
        %v1166 = vsub.f32 %v432, %v1165
        %v1167 = vand.u32 %v1166, 4294901760
        %1168 = vmatmul.f32.gmra.mxu0 %v1167
        %v1169 = vpop.f32.mrf.mxu0
        %v1170 = vadd.f32 %v987, %v1169
        %v1171 = vand.u32 %v435, 4294901760
        %v1172 = vsub.f32 %v435, %v1171
        %v1173 = vand.u32 %v1172, 4294901760
        %1174 = vmatmul.f32.gmra.mxu0 %v1173
        %v1175 = vpop.f32.mrf.mxu0
        %v1176 = vadd.f32 %v992, %v1175
        %v1177 = vand.u32 %v438, 4294901760
        %v1178 = vsub.f32 %v438, %v1177
        %v1179 = vand.u32 %v1178, 4294901760
        %1180 = vmatmul.f32.gmra.mxu0 %v1179
        %v1181 = vpop.f32.mrf.mxu0
        %v1182 = vadd.f32 %v997, %v1181
        %v1183 = vand.u32 %v441, 4294901760
        %v1184 = vsub.f32 %v441, %v1183
        %v1185 = vand.u32 %v1184, 4294901760
        %1186 = vmatmul.f32.gmra.mxu0 %v1185
        %v1187 = vpop.f32.mrf.mxu0
        %v1188 = vadd.f32 %v1002, %v1187
        %v1189 = vand.u32 %v444, 4294901760
        %v1190 = vsub.f32 %v444, %v1189
        %v1191 = vand.u32 %v1190, 4294901760
        %1192 = vmatmul.f32.gmra.mxu0 %v1191
        %v1193 = vpop.f32.mrf.mxu0
        %v1194 = vadd.f32 %v1007, %v1193
        %v1195 = vand.u32 %v447, 4294901760
        %v1196 = vsub.f32 %v447, %v1195
        %v1197 = vand.u32 %v1196, 4294901760
        %1198 = vmatmul.f32.gmra.mxu0 %v1197
        %v1199 = vpop.f32.mrf.mxu0
        %v1200 = vadd.f32 %v1012, %v1199
        %v1201 = vand.u32 %v450, 4294901760
        %v1202 = vsub.f32 %v450, %v1201
        %v1203 = vand.u32 %v1202, 4294901760
        %1204 = vmatmul.f32.gmra.mxu0 %v1203
        %v1205 = vpop.f32.mrf.mxu0
        %v1206 = vadd.f32 %v1017, %v1205
        %v1207 = vand.u32 %v453, 4294901760
        %v1208 = vsub.f32 %v453, %v1207
        %v1209 = vand.u32 %v1208, 4294901760
        %1210 = vmatmul.f32.gmra.mxu0 %v1209
        %v1211 = vpop.f32.mrf.mxu0
        %v1212 = vadd.f32 %v1022, %v1211
        %v1213 = vand.u32 %v456, 4294901760
        %v1214 = vsub.f32 %v456, %v1213
        %v1215 = vand.u32 %v1214, 4294901760
        %1216 = vmatmul.f32.gmra.mxu0 %v1215
        %v1217 = vpop.f32.mrf.mxu0
        %v1218 = vadd.f32 %v1027, %v1217
        %v1219 = vand.u32 %v459, 4294901760
        %v1220 = vsub.f32 %v459, %v1219
        %v1221 = vand.u32 %v1220, 4294901760
        %1222 = vmatmul.f32.gmra.mxu0 %v1221
        %v1223 = vpop.f32.mrf.mxu0
        %v1224 = vadd.f32 %v1032, %v1223
        %v1225 = vand.u32 %v462, 4294901760
        %v1226 = vsub.f32 %v462, %v1225
        %v1227 = vand.u32 %v1226, 4294901760
        %1228 = vmatmul.f32.gmra.mxu0 %v1227
        %v1229 = vpop.f32.mrf.mxu0
        %v1230 = vadd.f32 %v1037, %v1229
        %v1231 = vand.u32 %v465, 4294901760
        %v1232 = vsub.f32 %v465, %v1231
        %v1233 = vand.u32 %v1232, 4294901760
        %1234 = vmatmul.f32.gmra.mxu0 %v1233
        %v1235 = vpop.f32.mrf.mxu0
        %v1236 = vadd.f32 %v1042, %v1235
        %v1237 = vand.u32 %v468, 4294901760
        %v1238 = vsub.f32 %v468, %v1237
        %v1239 = vand.u32 %v1238, 4294901760
        %1240 = vmatmul.f32.gmra.mxu0 %v1239
        %v1241 = vpop.f32.mrf.mxu0
        %v1242 = vadd.f32 %v1047, %v1241
        %v1243 = vand.u32 %v471, 4294901760
        %v1244 = vsub.f32 %v471, %v1243
        %v1245 = vand.u32 %v1244, 4294901760
        %1246 = vmatmul.f32.gmra.mxu0 %v1245
        %v1247 = vpop.f32.mrf.mxu0
        %v1248 = vadd.f32 %v1052, %v1247
        %v1249 = vand.u32 %v474, 4294901760
        %v1250 = vsub.f32 %v474, %v1249
        %v1251 = vand.u32 %v1250, 4294901760
        %1252 = vmatmul.f32.gmra.mxu0 %v1251
        %v1253 = vpop.f32.mrf.mxu0
        %v1254 = vadd.f32 %v1057, %v1253
        %v1255 = vand.u32 %v477, 4294901760
        %v1256 = vsub.f32 %v477, %v1255
        %v1257 = vand.u32 %v1256, 4294901760
        %1258 = vmatmul.f32.gmra.mxu0 %v1257
        %v1259 = vpop.f32.mrf.mxu0
        %v1260 = vadd.f32 %v1062, %v1259
        %v1261 = vand.u32 %v480, 4294901760
        %v1262 = vsub.f32 %v480, %v1261
        %v1263 = vand.u32 %v1262, 4294901760
        %1264 = vmatmul.f32.gmra.mxu0 %v1263
        %v1265 = vpop.f32.mrf.mxu0
        %v1266 = vadd.f32 %v1067, %v1265
        %v1267 = vand.u32 %v483, 4294901760
        %v1268 = vsub.f32 %v483, %v1267
        %v1269 = vand.u32 %v1268, 4294901760
        %1270 = vmatmul.f32.gmra.mxu0 %v1269
        %v1271 = vpop.f32.mrf.mxu0
        %v1272 = vadd.f32 %v1072, %v1271
        %v1273 = vand.u32 %v486, 4294901760
        %v1274 = vsub.f32 %v486, %v1273
        %v1275 = vand.u32 %v1274, 4294901760
        %1276 = vmatmul.f32.gmra.mxu0 %v1275
        %v1277 = vpop.f32.mrf.mxu0
        %v1278 = vadd.f32 %v1077, %v1277
        %v1279 = vand.u32 %v489, 4294901760
        %v1280 = vsub.f32 %v489, %v1279
        %v1281 = vand.u32 %v1280, 4294901760
        %1282 = vmatmul.f32.gmra.mxu0 %v1281
        %v1283 = vpop.f32.mrf.mxu0
        %v1284 = vadd.f32 %v1082, %v1283
        %v1285 = vand.u32 %v492, 4294901760
        %v1286 = vsub.f32 %v492, %v1285
        %v1287 = vand.u32 %v1286, 4294901760
        %1288 = vmatmul.f32.gmra.mxu0 %v1287
        %v1289 = vpop.f32.mrf.mxu0
        %v1290 = vadd.f32 %v1087, %v1289
        %v1291 = vand.u32 %v495, 4294901760
        %v1292 = vsub.f32 %v495, %v1291
        %v1293 = vand.u32 %v1292, 4294901760
        %1294 = vmatmul.f32.gmra.mxu0 %v1293
        %v1295 = vpop.f32.mrf.mxu0
        %v1296 = vadd.f32 %v1092, %v1295
        %v1297 = vand.u32 %v498, 4294901760
        %v1298 = vsub.f32 %v498, %v1297
        %v1299 = vand.u32 %v1298, 4294901760
        %1300 = vmatmul.f32.gmra.mxu0 %v1299
        %v1301 = vpop.f32.mrf.mxu0
        %v1302 = vadd.f32 %v1097, %v1301
        %v1303 = vand.u32 %v501, 4294901760
        %v1304 = vsub.f32 %v501, %v1303
        %v1305 = vand.u32 %v1304, 4294901760
        %1306 = vmatmul.f32.gmra.mxu0 %v1305
        %v1307 = vpop.f32.mrf.mxu0
        %v1308 = vadd.f32 %v1102, %v1307
        %v1309 = vand.u32 %v504, 4294901760
        %v1310 = vsub.f32 %v504, %v1309
        %v1311 = vand.u32 %v1310, 4294901760
        %1312 = vmatmul.f32.gmra.mxu0 %v1311
        %v1313 = vpop.f32.mrf.mxu0
        %v1314 = vadd.f32 %v1107, %v1313
        %v1315 = vand.u32 %v507, 4294901760
        %v1316 = vsub.f32 %v507, %v1315
        %v1317 = vand.u32 %v1316, 4294901760
        %1318 = vmatmul.f32.gmra.mxu0 %v1317
        %v1319 = vpop.f32.mrf.mxu0
        %v1320 = vadd.f32 %v1112, %v1319
        %v1321 = vand.u32 %v510, 4294901760
        %v1322 = vsub.f32 %v510, %v1321
        %v1323 = vand.u32 %v1322, 4294901760
        %1324 = vmatmul.f32.gmra.mxu0 %v1323
        %v1325 = vpop.f32.mrf.mxu0
        %v1326 = vadd.f32 %v1117, %v1325
        %v1327 = vand.u32 %v513, 4294901760
        %v1328 = vsub.f32 %v513, %v1327
        %v1329 = vand.u32 %v1328, 4294901760
        %1330 = vmatmul.f32.gmra.mxu0 %v1329
        %v1331 = vpop.f32.mrf.mxu0
        %v1332 = vadd.f32 %v1122, %v1331
        %v1333 = vand.u32 %v516, 4294901760
        %v1334 = vsub.f32 %v516, %v1333
        %v1335 = vand.u32 %v1334, 4294901760
        %1336 = vmatmul.f32.gmra.mxu0 %v1335
        %v1337 = vpop.f32.mrf.mxu0
        %v1338 = vadd.f32 %v1127, %v1337
        %1339 = vdwg.mxu0
        %1340 = vmatpush.msra.mxu0 0.0
        %1341 = vmatpush.msra.mxu0 0.0
        %1342 = vmatpush.msra.mxu0 0.0
        %1343 = vmatpush.msra.mxu0 0.0
        %1344 = vmatpush.msra.mxu0 0.0
        %1345 = vmatpush.msra.mxu0 0.0
        %1346 = vmatpush.msra.mxu0 0.0
        %1347 = vmatpush.msra.mxu0 0.0
        %1348 = vmatpush.msra.mxu0 0.0
        %1349 = vmatpush.msra.mxu0 0.0
        %1350 = vmatpush.msra.mxu0 0.0
        %1351 = vmatpush.msra.mxu0 0.0
        %1352 = vmatpush.msra.mxu0 0.0
        %1353 = vmatpush.msra.mxu0 0.0
        %v1354 = vand.u32 %v352, 4294901760
        %v1355 = vsub.f32 %v352, %v1354
        %v1356 = vand.u32 %v1355, 4294901760
        %1357 = vmatpush.msra.mxu0 %v1356
        %v1358 = vand.u32 %v351, 4294901760
        %v1359 = vsub.f32 %v351, %v1358
        %v1360 = vand.u32 %v1359, 4294901760
        %1361 = vmatpush.msra.mxu0 %v1360
        %v1362 = vand.u32 %v423, 4294901760
        %1363 = vmatmul.f32.gmra.mxu0 %v1362
        %v1364 = vpop.f32.mrf.mxu0
        %v1365 = vadd.f32 %v1152, %v1364
        %v1366 = vand.u32 %v426, 4294901760
        %1367 = vmatmul.f32.gmra.mxu0 %v1366
        %v1368 = vpop.f32.mrf.mxu0
        %v1369 = vadd.f32 %v1158, %v1368
        %v1370 = vand.u32 %v429, 4294901760
        %1371 = vmatmul.f32.gmra.mxu0 %v1370
        %v1372 = vpop.f32.mrf.mxu0
        %v1373 = vadd.f32 %v1164, %v1372
        %v1374 = vand.u32 %v432, 4294901760
        %1375 = vmatmul.f32.gmra.mxu0 %v1374
        %v1376 = vpop.f32.mrf.mxu0
        %v1377 = vadd.f32 %v1170, %v1376
        %v1378 = vand.u32 %v435, 4294901760
        %1379 = vmatmul.f32.gmra.mxu0 %v1378
        %v1380 = vpop.f32.mrf.mxu0
        %v1381 = vadd.f32 %v1176, %v1380
        %v1382 = vand.u32 %v438, 4294901760
        %1383 = vmatmul.f32.gmra.mxu0 %v1382
        %v1384 = vpop.f32.mrf.mxu0
        %v1385 = vadd.f32 %v1182, %v1384
        %v1386 = vand.u32 %v441, 4294901760
        %1387 = vmatmul.f32.gmra.mxu0 %v1386
        %v1388 = vpop.f32.mrf.mxu0
        %v1389 = vadd.f32 %v1188, %v1388
        %v1390 = vand.u32 %v444, 4294901760
        %1391 = vmatmul.f32.gmra.mxu0 %v1390
        %v1392 = vpop.f32.mrf.mxu0
        %v1393 = vadd.f32 %v1194, %v1392
        %v1394 = vand.u32 %v447, 4294901760
        %1395 = vmatmul.f32.gmra.mxu0 %v1394
        %v1396 = vpop.f32.mrf.mxu0
        %v1397 = vadd.f32 %v1200, %v1396
        %v1398 = vand.u32 %v450, 4294901760
        %1399 = vmatmul.f32.gmra.mxu0 %v1398
        %v1400 = vpop.f32.mrf.mxu0
        %v1401 = vadd.f32 %v1206, %v1400
        %v1402 = vand.u32 %v453, 4294901760
        %1403 = vmatmul.f32.gmra.mxu0 %v1402
        %v1404 = vpop.f32.mrf.mxu0
        %v1405 = vadd.f32 %v1212, %v1404
        %v1406 = vand.u32 %v456, 4294901760
        %1407 = vmatmul.f32.gmra.mxu0 %v1406
        %v1408 = vpop.f32.mrf.mxu0
        %v1409 = vadd.f32 %v1218, %v1408
        %v1410 = vand.u32 %v459, 4294901760
        %1411 = vmatmul.f32.gmra.mxu0 %v1410
        %v1412 = vpop.f32.mrf.mxu0
        %v1413 = vadd.f32 %v1224, %v1412
        %v1414 = vand.u32 %v462, 4294901760
        %1415 = vmatmul.f32.gmra.mxu0 %v1414
        %v1416 = vpop.f32.mrf.mxu0
        %v1417 = vadd.f32 %v1230, %v1416
        %v1418 = vand.u32 %v465, 4294901760
        %1419 = vmatmul.f32.gmra.mxu0 %v1418
        %v1420 = vpop.f32.mrf.mxu0
        %v1421 = vadd.f32 %v1236, %v1420
        %v1422 = vand.u32 %v468, 4294901760
        %1423 = vmatmul.f32.gmra.mxu0 %v1422
        %v1424 = vpop.f32.mrf.mxu0
        %v1425 = vadd.f32 %v1242, %v1424
        %v1426 = vand.u32 %v471, 4294901760
        %1427 = vmatmul.f32.gmra.mxu0 %v1426
        %v1428 = vpop.f32.mrf.mxu0
        %v1429 = vadd.f32 %v1248, %v1428
        %v1430 = vand.u32 %v474, 4294901760
        %1431 = vmatmul.f32.gmra.mxu0 %v1430
        %v1432 = vpop.f32.mrf.mxu0
        %v1433 = vadd.f32 %v1254, %v1432
        %v1434 = vand.u32 %v477, 4294901760
        %1435 = vmatmul.f32.gmra.mxu0 %v1434
        %v1436 = vpop.f32.mrf.mxu0
        %v1437 = vadd.f32 %v1260, %v1436
        %v1438 = vand.u32 %v480, 4294901760
        %1439 = vmatmul.f32.gmra.mxu0 %v1438
        %v1440 = vpop.f32.mrf.mxu0
        %v1441 = vadd.f32 %v1266, %v1440
        %v1442 = vand.u32 %v483, 4294901760
        %1443 = vmatmul.f32.gmra.mxu0 %v1442
        %v1444 = vpop.f32.mrf.mxu0
        %v1445 = vadd.f32 %v1272, %v1444
        %v1446 = vand.u32 %v486, 4294901760
        %1447 = vmatmul.f32.gmra.mxu0 %v1446
        %v1448 = vpop.f32.mrf.mxu0
        %v1449 = vadd.f32 %v1278, %v1448
        %v1450 = vand.u32 %v489, 4294901760
        %1451 = vmatmul.f32.gmra.mxu0 %v1450
        %v1452 = vpop.f32.mrf.mxu0
        %v1453 = vadd.f32 %v1284, %v1452
        %v1454 = vand.u32 %v492, 4294901760
        %1455 = vmatmul.f32.gmra.mxu0 %v1454
        %v1456 = vpop.f32.mrf.mxu0
        %v1457 = vadd.f32 %v1290, %v1456
        %v1458 = vand.u32 %v495, 4294901760
        %1459 = vmatmul.f32.gmra.mxu0 %v1458
        %v1460 = vpop.f32.mrf.mxu0
        %v1461 = vadd.f32 %v1296, %v1460
        %v1462 = vand.u32 %v498, 4294901760
        %1463 = vmatmul.f32.gmra.mxu0 %v1462
        %v1464 = vpop.f32.mrf.mxu0
        %v1465 = vadd.f32 %v1302, %v1464
        %v1466 = vand.u32 %v501, 4294901760
        %1467 = vmatmul.f32.gmra.mxu0 %v1466
        %v1468 = vpop.f32.mrf.mxu0
        %v1469 = vadd.f32 %v1308, %v1468
        %v1470 = vand.u32 %v504, 4294901760
        %1471 = vmatmul.f32.gmra.mxu0 %v1470
        %v1472 = vpop.f32.mrf.mxu0
        %v1473 = vadd.f32 %v1314, %v1472
        %v1474 = vand.u32 %v507, 4294901760
        %1475 = vmatmul.f32.gmra.mxu0 %v1474
        %v1476 = vpop.f32.mrf.mxu0
        %v1477 = vadd.f32 %v1320, %v1476
        %v1478 = vand.u32 %v510, 4294901760
        %1479 = vmatmul.f32.gmra.mxu0 %v1478
        %v1480 = vpop.f32.mrf.mxu0
        %v1481 = vadd.f32 %v1326, %v1480
        %v1482 = vand.u32 %v513, 4294901760
        %1483 = vmatmul.f32.gmra.mxu0 %v1482
        %v1484 = vpop.f32.mrf.mxu0
        %v1485 = vadd.f32 %v1332, %v1484
        %v1486 = vand.u32 %v516, 4294901760
        %1487 = vmatmul.f32.gmra.mxu0 %v1486
        %v1488 = vpop.f32.mrf.mxu0
        %v1489 = vadd.f32 %v1338, %v1488
        %1490 = vdwg.mxu0
        %1491 = vmatpush.msra.mxu0 0.0
        %1492 = vmatpush.msra.mxu0 0.0
        %1493 = vmatpush.msra.mxu0 0.0
        %1494 = vmatpush.msra.mxu0 0.0
        %1495 = vmatpush.msra.mxu0 0.0
        %1496 = vmatpush.msra.mxu0 0.0
        %1497 = vmatpush.msra.mxu0 0.0
        %1498 = vmatpush.msra.mxu0 0.0
        %1499 = vmatpush.msra.mxu0 0.0
        %1500 = vmatpush.msra.mxu0 0.0
        %1501 = vmatpush.msra.mxu0 0.0
        %1502 = vmatpush.msra.mxu0 0.0
        %1503 = vmatpush.msra.mxu0 0.0
        %1504 = vmatpush.msra.mxu0 0.0
        %v1505 = vand.u32 %v352, 4294901760
        %1506 = vmatpush.msra.mxu0 %v1505
        %v1507 = vand.u32 %v351, 4294901760
        %1508 = vmatpush.msra.mxu0 %v1507
        %v1509 = vand.u32 %v423, 4294901760
        %1510 = vmatmul.f32.gmra.mxu0 %v1509
        %v1511 = vpop.f32.mrf.mxu0
        %v1512 = vadd.f32 %v1365, %v1511
        %v1513 = vand.u32 %v426, 4294901760
        %1514 = vmatmul.f32.gmra.mxu0 %v1513
        %v1515 = vpop.f32.mrf.mxu0
        %v1516 = vadd.f32 %v1369, %v1515
        %v1517 = vand.u32 %v429, 4294901760
        %1518 = vmatmul.f32.gmra.mxu0 %v1517
        %v1519 = vpop.f32.mrf.mxu0
        %v1520 = vadd.f32 %v1373, %v1519
        %v1521 = vand.u32 %v432, 4294901760
        %1522 = vmatmul.f32.gmra.mxu0 %v1521
        %v1523 = vpop.f32.mrf.mxu0
        %v1524 = vadd.f32 %v1377, %v1523
        %v1525 = vand.u32 %v435, 4294901760
        %1526 = vmatmul.f32.gmra.mxu0 %v1525
        %v1527 = vpop.f32.mrf.mxu0
        %v1528 = vadd.f32 %v1381, %v1527
        %v1529 = vand.u32 %v438, 4294901760
        %1530 = vmatmul.f32.gmra.mxu0 %v1529
        %v1531 = vpop.f32.mrf.mxu0
        %v1532 = vadd.f32 %v1385, %v1531
        %v1533 = vand.u32 %v441, 4294901760
        %1534 = vmatmul.f32.gmra.mxu0 %v1533
        %v1535 = vpop.f32.mrf.mxu0
        %v1536 = vadd.f32 %v1389, %v1535
        %v1537 = vand.u32 %v444, 4294901760
        %1538 = vmatmul.f32.gmra.mxu0 %v1537
        %v1539 = vpop.f32.mrf.mxu0
        %v1540 = vadd.f32 %v1393, %v1539
        %v1541 = vand.u32 %v447, 4294901760
        %1542 = vmatmul.f32.gmra.mxu0 %v1541
        %v1543 = vpop.f32.mrf.mxu0
        %v1544 = vadd.f32 %v1397, %v1543
        %v1545 = vand.u32 %v450, 4294901760
        %1546 = vmatmul.f32.gmra.mxu0 %v1545
        %v1547 = vpop.f32.mrf.mxu0
        %v1548 = vadd.f32 %v1401, %v1547
        %v1549 = vand.u32 %v453, 4294901760
        %1550 = vmatmul.f32.gmra.mxu0 %v1549
        %v1551 = vpop.f32.mrf.mxu0
        %v1552 = vadd.f32 %v1405, %v1551
        %v1553 = vand.u32 %v456, 4294901760
        %1554 = vmatmul.f32.gmra.mxu0 %v1553
        %v1555 = vpop.f32.mrf.mxu0
        %v1556 = vadd.f32 %v1409, %v1555
        %v1557 = vand.u32 %v459, 4294901760
        %1558 = vmatmul.f32.gmra.mxu0 %v1557
        %v1559 = vpop.f32.mrf.mxu0
        %v1560 = vadd.f32 %v1413, %v1559
        %v1561 = vand.u32 %v462, 4294901760
        %1562 = vmatmul.f32.gmra.mxu0 %v1561
        %v1563 = vpop.f32.mrf.mxu0
        %v1564 = vadd.f32 %v1417, %v1563
        %v1565 = vand.u32 %v465, 4294901760
        %1566 = vmatmul.f32.gmra.mxu0 %v1565
        %v1567 = vpop.f32.mrf.mxu0
        %v1568 = vadd.f32 %v1421, %v1567
        %v1569 = vand.u32 %v468, 4294901760
        %1570 = vmatmul.f32.gmra.mxu0 %v1569
        %v1571 = vpop.f32.mrf.mxu0
        %v1572 = vadd.f32 %v1425, %v1571
        %v1573 = vand.u32 %v471, 4294901760
        %1574 = vmatmul.f32.gmra.mxu0 %v1573
        %v1575 = vpop.f32.mrf.mxu0
        %v1576 = vadd.f32 %v1429, %v1575
        %v1577 = vand.u32 %v474, 4294901760
        %1578 = vmatmul.f32.gmra.mxu0 %v1577
        %v1579 = vpop.f32.mrf.mxu0
        %v1580 = vadd.f32 %v1433, %v1579
        %v1581 = vand.u32 %v477, 4294901760
        %1582 = vmatmul.f32.gmra.mxu0 %v1581
        %v1583 = vpop.f32.mrf.mxu0
        %v1584 = vadd.f32 %v1437, %v1583
        %v1585 = vand.u32 %v480, 4294901760
        %1586 = vmatmul.f32.gmra.mxu0 %v1585
        %v1587 = vpop.f32.mrf.mxu0
        %v1588 = vadd.f32 %v1441, %v1587
        %v1589 = vand.u32 %v483, 4294901760
        %1590 = vmatmul.f32.gmra.mxu0 %v1589
        %v1591 = vpop.f32.mrf.mxu0
        %v1592 = vadd.f32 %v1445, %v1591
        %v1593 = vand.u32 %v486, 4294901760
        %1594 = vmatmul.f32.gmra.mxu0 %v1593
        %v1595 = vpop.f32.mrf.mxu0
        %v1596 = vadd.f32 %v1449, %v1595
        %v1597 = vand.u32 %v489, 4294901760
        %1598 = vmatmul.f32.gmra.mxu0 %v1597
        %v1599 = vpop.f32.mrf.mxu0
        %v1600 = vadd.f32 %v1453, %v1599
        %v1601 = vand.u32 %v492, 4294901760
        %1602 = vmatmul.f32.gmra.mxu0 %v1601
        %v1603 = vpop.f32.mrf.mxu0
        %v1604 = vadd.f32 %v1457, %v1603
        %v1605 = vand.u32 %v495, 4294901760
        %1606 = vmatmul.f32.gmra.mxu0 %v1605
        %v1607 = vpop.f32.mrf.mxu0
        %v1608 = vadd.f32 %v1461, %v1607
        %v1609 = vand.u32 %v498, 4294901760
        %1610 = vmatmul.f32.gmra.mxu0 %v1609
        %v1611 = vpop.f32.mrf.mxu0
        %v1612 = vadd.f32 %v1465, %v1611
        %v1613 = vand.u32 %v501, 4294901760
        %1614 = vmatmul.f32.gmra.mxu0 %v1613
        %v1615 = vpop.f32.mrf.mxu0
        %v1616 = vadd.f32 %v1469, %v1615
        %v1617 = vand.u32 %v504, 4294901760
        %1618 = vmatmul.f32.gmra.mxu0 %v1617
        %v1619 = vpop.f32.mrf.mxu0
        %v1620 = vadd.f32 %v1473, %v1619
        %v1621 = vand.u32 %v507, 4294901760
        %1622 = vmatmul.f32.gmra.mxu0 %v1621
        %v1623 = vpop.f32.mrf.mxu0
        %v1624 = vadd.f32 %v1477, %v1623
        %v1625 = vand.u32 %v510, 4294901760
        %1626 = vmatmul.f32.gmra.mxu0 %v1625
        %v1627 = vpop.f32.mrf.mxu0
        %v1628 = vadd.f32 %v1481, %v1627
        %v1629 = vand.u32 %v513, 4294901760
        %1630 = vmatmul.f32.gmra.mxu0 %v1629
        %v1631 = vpop.f32.mrf.mxu0
        %v1632 = vadd.f32 %v1485, %v1631
        %v1633 = vand.u32 %v516, 4294901760
        %1634 = vmatmul.f32.gmra.mxu0 %v1633
        %v1635 = vpop.f32.mrf.mxu0
        %v1636 = vadd.f32 %v1489, %v1635
        %1637 = vdwg.mxu0
        %1638 = vst [vmem:[%s335] sm:$0xff] %v1512
        %1639 = vst [vmem:[%s335 + $0x8] sm:$0xff] %v1516
        %1640 = vst [vmem:[%s335 + $0x10] sm:$0xff] %v1520
        %1641 = vst [vmem:[%s335 + $0x18] sm:$0xff] %v1524
        %1642 = vst [vmem:[%s335 + $0x20] sm:$0xff] %v1528
        %1643 = vst [vmem:[%s335 + $0x28] sm:$0xff] %v1532
        %1644 = vst [vmem:[%s335 + $0x30] sm:$0xff] %v1536
        %1645 = vst [vmem:[%s335 + $0x38] sm:$0xff] %v1540
        %1646 = vst [vmem:[%s335 + $0x40] sm:$0xff] %v1544
        %1647 = vst [vmem:[%s335 + $0x48] sm:$0xff] %v1548
        %1648 = vst [vmem:[%s335 + $0x50] sm:$0xff] %v1552
        %1649 = vst [vmem:[%s335 + $0x58] sm:$0xff] %v1556
        %1650 = vst [vmem:[%s335 + $0x60] sm:$0xff] %v1560
        %1651 = vst [vmem:[%s335 + $0x68] sm:$0xff] %v1564
        %1652 = vst [vmem:[%s335 + $0x70] sm:$0xff] %v1568
        %1653 = vst [vmem:[%s335 + $0x78] sm:$0xff] %v1572
        %1654 = vst [vmem:[%s335 + $0x80] sm:$0xff] %v1576
        %1655 = vst [vmem:[%s335 + $0x88] sm:$0xff] %v1580
        %1656 = vst [vmem:[%s335 + $0x90] sm:$0xff] %v1584
        %1657 = vst [vmem:[%s335 + $0x98] sm:$0xff] %v1588
        %1658 = vst [vmem:[%s335 + $0xa0] sm:$0xff] %v1592
        %1659 = vst [vmem:[%s335 + $0xa8] sm:$0xff] %v1596
        %1660 = vst [vmem:[%s335 + $0xb0] sm:$0xff] %v1600
        %1661 = vst [vmem:[%s335 + $0xb8] sm:$0xff] %v1604
        %1662 = vst [vmem:[%s335 + $0xc0] sm:$0xff] %v1608
        %1663 = vst [vmem:[%s335 + $0xc8] sm:$0xff] %v1612
        %1664 = vst [vmem:[%s335 + $0xd0] sm:$0xff] %v1616
        %1665 = vst [vmem:[%s335 + $0xd8] sm:$0xff] %v1620
        %1666 = vst [vmem:[%s335 + $0xe0] sm:$0xff] %v1624
        %1667 = vst [vmem:[%s335 + $0xe8] sm:$0xff] %v1628
        %1668 = vst [vmem:[%s335 + $0xf0] sm:$0xff] %v1632
        %1669 = vst [vmem:[%s335 + $0xf8] sm:$0xff] %v1636
        %v1670 = vld [vmem:[%s3] sm:$0xff]
        %v1671 = vld [vmem:[%s3 + $0x8] sm:$0xff]
        %v1672 = vld [vmem:[%s4] sm:$0xff]
        %1674 = vset.pattern.permute.xlu0 0
        %1675 = vperm.xlu0 %1674, %v1672
        %v1676 = vpop.permute.xlu0 %1675
        %1678 = vxpose.xlu0.b32.start [1/16] %v1670, 128
        %1679 = vxpose.xlu0.b32.cont [2/16] %v1671, 128
        %1680 = vxpose.xlu0.b32.cont [3/16] 0.0, 128
        %1681 = vxpose.xlu0.b32.cont [4/16] 0.0, 128
        %1682 = vxpose.xlu0.b32.cont [5/16] 0.0, 128
        %1683 = vxpose.xlu0.b32.cont [6/16] 0.0, 128
        %1684 = vxpose.xlu0.b32.cont [7/16] 0.0, 128
        %1685 = vxpose.xlu0.b32.cont [8/16] 0.0, 128
        %1686 = vxpose.xlu0.b32.cont [9/16] 0.0, 128
        %1687 = vxpose.xlu0.b32.cont [10/16] 0.0, 128
        %1688 = vxpose.xlu0.b32.cont [11/16] 0.0, 128
        %1689 = vxpose.xlu0.b32.cont [12/16] 0.0, 128
        %1690 = vxpose.xlu0.b32.cont [13/16] 0.0, 128
        %1691 = vxpose.xlu0.b32.cont [14/16] 0.0, 128
        %1692 = vxpose.xlu0.b32.cont [15/16] 0.0, 128
        %1693 = vxpose.xlu0.b32.end [16/16] 0.0, 128
        %v1694 = vpop.trf.xlu0
        %v1695 = vpop.trf.xlu0
        %v1696 = vpop.trf.xlu0
        %v1697 = vpop.trf.xlu0
        %v1698 = vpop.trf.xlu0
        %v1699 = vpop.trf.xlu0
        %v1700 = vpop.trf.xlu0
        %v1701 = vpop.trf.xlu0
        %v1702 = vpop.trf.xlu0
        %v1703 = vpop.trf.xlu0
        %v1704 = vpop.trf.xlu0
        %v1705 = vpop.trf.xlu0
        %v1706 = vpop.trf.xlu0
        %v1707 = vpop.trf.xlu0
        %v1708 = vpop.trf.xlu0
        %v1709 = vpop.trf.xlu0
        %v1711 = vsel %vm421, %v1694, 0
        %1713 = vmatpush.msra.mxu0 0.0
        %1714 = vmatpush.msra.mxu0 0.0
        %1715 = vmatpush.msra.mxu0 0.0
        %1716 = vmatpush.msra.mxu0 0.0
        %1717 = vmatpush.msra.mxu0 0.0
        %1718 = vmatpush.msra.mxu0 0.0
        %1719 = vmatpush.msra.mxu0 0.0
        %1720 = vmatpush.msra.mxu0 0.0
        %1721 = vmatpush.msra.mxu0 0.0
        %1722 = vmatpush.msra.mxu0 0.0
        %1723 = vmatpush.msra.mxu0 0.0
        %1724 = vmatpush.msra.mxu0 0.0
        %1725 = vmatpush.msra.mxu0 0.0
        %1726 = vmatpush.msra.mxu0 0.0
        %v1727 = vand.u32 %v349, 4294901760
        %1728 = vmatpush.msra.mxu0 %v1727
        %v1729 = vand.u32 %v347, 4294901760
        %1730 = vmatpush.msra.mxu0 %v1729
        %v1731 = vand.u32 %v1711, 4294901760
        %v1732 = vsub.f32 %v1711, %v1731
        %v1733 = vand.u32 %v1732, 4294901760
        %v1734 = vsub.f32 %v1732, %v1733
        %v1735 = vand.u32 %v1734, 4294901760
        %1736 = vmatmul.f32.gmra.mxu0 %v1735
        %v1737 = vpop.f32.mrf.mxu0
        %v1738 = vadd.f32 %v1676, %v1737
        %1739 = vdwg.mxu0
        %1740 = vmatpush.msra.mxu0 0.0
        %1741 = vmatpush.msra.mxu0 0.0
        %1742 = vmatpush.msra.mxu0 0.0
        %1743 = vmatpush.msra.mxu0 0.0
        %1744 = vmatpush.msra.mxu0 0.0
        %1745 = vmatpush.msra.mxu0 0.0
        %1746 = vmatpush.msra.mxu0 0.0
        %1747 = vmatpush.msra.mxu0 0.0
        %1748 = vmatpush.msra.mxu0 0.0
        %1749 = vmatpush.msra.mxu0 0.0
        %1750 = vmatpush.msra.mxu0 0.0
        %1751 = vmatpush.msra.mxu0 0.0
        %1752 = vmatpush.msra.mxu0 0.0
        %1753 = vmatpush.msra.mxu0 0.0
        %v1754 = vand.u32 %v349, 4294901760
        %v1755 = vsub.f32 %v349, %v1754
        %v1756 = vand.u32 %v1755, 4294901760
        %v1757 = vsub.f32 %v1755, %v1756
        %v1758 = vand.u32 %v1757, 4294901760
        %1759 = vmatpush.msra.mxu0 %v1758
        %v1760 = vand.u32 %v347, 4294901760
        %v1761 = vsub.f32 %v347, %v1760
        %v1762 = vand.u32 %v1761, 4294901760
        %v1763 = vsub.f32 %v1761, %v1762
        %v1764 = vand.u32 %v1763, 4294901760
        %1765 = vmatpush.msra.mxu0 %v1764
        %v1766 = vand.u32 %v1711, 4294901760
        %1767 = vmatmul.f32.gmra.mxu0 %v1766
        %v1768 = vpop.f32.mrf.mxu0
        %v1769 = vadd.f32 %v1738, %v1768
        %1770 = vdwg.mxu0
        %1771 = vmatpush.msra.mxu0 0.0
        %1772 = vmatpush.msra.mxu0 0.0
        %1773 = vmatpush.msra.mxu0 0.0
        %1774 = vmatpush.msra.mxu0 0.0
        %1775 = vmatpush.msra.mxu0 0.0
        %1776 = vmatpush.msra.mxu0 0.0
        %1777 = vmatpush.msra.mxu0 0.0
        %1778 = vmatpush.msra.mxu0 0.0
        %1779 = vmatpush.msra.mxu0 0.0
        %1780 = vmatpush.msra.mxu0 0.0
        %1781 = vmatpush.msra.mxu0 0.0
        %1782 = vmatpush.msra.mxu0 0.0
        %1783 = vmatpush.msra.mxu0 0.0
        %1784 = vmatpush.msra.mxu0 0.0
        %v1785 = vand.u32 %v349, 4294901760
        %v1786 = vsub.f32 %v349, %v1785
        %1787 = vmatpush.msra.mxu0 %v1786
        %v1788 = vand.u32 %v347, 4294901760
        %v1789 = vsub.f32 %v347, %v1788
        %1790 = vmatpush.msra.mxu0 %v1789
        %v1791 = vand.u32 %v1711, 4294901760
        %v1792 = vsub.f32 %v1711, %v1791
        %1793 = vmatmul.f32.gmra.mxu0 %v1792
        %v1794 = vpop.f32.mrf.mxu0
        %v1795 = vadd.f32 %v1769, %v1794
        %1796 = vdwg.mxu0
        %1797 = vmatpush.msra.mxu0 0.0
        %1798 = vmatpush.msra.mxu0 0.0
        %1799 = vmatpush.msra.mxu0 0.0
        %1800 = vmatpush.msra.mxu0 0.0
        %1801 = vmatpush.msra.mxu0 0.0
        %1802 = vmatpush.msra.mxu0 0.0
        %1803 = vmatpush.msra.mxu0 0.0
        %1804 = vmatpush.msra.mxu0 0.0
        %1805 = vmatpush.msra.mxu0 0.0
        %1806 = vmatpush.msra.mxu0 0.0
        %1807 = vmatpush.msra.mxu0 0.0
        %1808 = vmatpush.msra.mxu0 0.0
        %1809 = vmatpush.msra.mxu0 0.0
        %1810 = vmatpush.msra.mxu0 0.0
        %v1811 = vand.u32 %v349, 4294901760
        %1812 = vmatpush.msra.mxu0 %v1811
        %v1813 = vand.u32 %v347, 4294901760
        %1814 = vmatpush.msra.mxu0 %v1813
        %v1815 = vand.u32 %v1711, 4294901760
        %v1816 = vsub.f32 %v1711, %v1815
        %v1817 = vand.u32 %v1816, 4294901760
        %1818 = vmatmul.f32.gmra.mxu0 %v1817
        %v1819 = vpop.f32.mrf.mxu0
        %v1820 = vadd.f32 %v1795, %v1819
        %1821 = vdwg.mxu0
        %1822 = vmatpush.msra.mxu0 0.0
        %1823 = vmatpush.msra.mxu0 0.0
        %1824 = vmatpush.msra.mxu0 0.0
        %1825 = vmatpush.msra.mxu0 0.0
        %1826 = vmatpush.msra.mxu0 0.0
        %1827 = vmatpush.msra.mxu0 0.0
        %1828 = vmatpush.msra.mxu0 0.0
        %1829 = vmatpush.msra.mxu0 0.0
        %1830 = vmatpush.msra.mxu0 0.0
        %1831 = vmatpush.msra.mxu0 0.0
        %1832 = vmatpush.msra.mxu0 0.0
        %1833 = vmatpush.msra.mxu0 0.0
        %1834 = vmatpush.msra.mxu0 0.0
        %1835 = vmatpush.msra.mxu0 0.0
        %v1836 = vand.u32 %v349, 4294901760
        %v1837 = vsub.f32 %v349, %v1836
        %v1838 = vand.u32 %v1837, 4294901760
        %1839 = vmatpush.msra.mxu0 %v1838
        %v1840 = vand.u32 %v347, 4294901760
        %v1841 = vsub.f32 %v347, %v1840
        %v1842 = vand.u32 %v1841, 4294901760
        %1843 = vmatpush.msra.mxu0 %v1842
        %v1844 = vand.u32 %v1711, 4294901760
        %1845 = vmatmul.f32.gmra.mxu0 %v1844
        %v1846 = vpop.f32.mrf.mxu0
        %v1847 = vadd.f32 %v1820, %v1846
        %1848 = vdwg.mxu0
        %1849 = vmatpush.msra.mxu0 0.0
        %1850 = vmatpush.msra.mxu0 0.0
        %1851 = vmatpush.msra.mxu0 0.0
        %1852 = vmatpush.msra.mxu0 0.0
        %1853 = vmatpush.msra.mxu0 0.0
        %1854 = vmatpush.msra.mxu0 0.0
        %1855 = vmatpush.msra.mxu0 0.0
        %1856 = vmatpush.msra.mxu0 0.0
        %1857 = vmatpush.msra.mxu0 0.0
        %1858 = vmatpush.msra.mxu0 0.0
        %1859 = vmatpush.msra.mxu0 0.0
        %1860 = vmatpush.msra.mxu0 0.0
        %1861 = vmatpush.msra.mxu0 0.0
        %1862 = vmatpush.msra.mxu0 0.0
        %v1863 = vand.u32 %v349, 4294901760
        %1864 = vmatpush.msra.mxu0 %v1863
        %v1865 = vand.u32 %v347, 4294901760
        %1866 = vmatpush.msra.mxu0 %v1865
        %v1867 = vand.u32 %v1711, 4294901760
        %1868 = vmatmul.f32.gmra.mxu0 %v1867
        %v1869 = vpop.f32.mrf.mxu0
        %v1870 = vadd.f32 %v1847, %v1869
        %1871 = vdwg.mxu0
        %1872 = vmatpush.msra.mxu0 0.0
        %1873 = vmatpush.msra.mxu0 0.0
        %1874 = vmatpush.msra.mxu0 0.0
        %1875 = vmatpush.msra.mxu0 0.0
        %1876 = vmatpush.msra.mxu0 0.0
        %1877 = vmatpush.msra.mxu0 0.0
        %1878 = vmatpush.msra.mxu0 0.0
        %1879 = vmatpush.msra.mxu0 0.0
        %1880 = vmatpush.msra.mxu0 0.0
        %1881 = vmatpush.msra.mxu0 0.0
        %1882 = vmatpush.msra.mxu0 0.0
        %1883 = vmatpush.msra.mxu0 0.0
        %1884 = vmatpush.msra.mxu0 0.0
        %1885 = vmatpush.msra.mxu0 0.0
        %v1886 = vand.u32 %v350, 4294901760
        %1887 = vmatpush.msra.mxu0 %v1886
        %v1888 = vand.u32 %v348, 4294901760
        %1889 = vmatpush.msra.mxu0 %v1888
        %v1890 = vand.u32 %v1711, 4294901760
        %v1891 = vsub.f32 %v1711, %v1890
        %v1892 = vand.u32 %v1891, 4294901760
        %v1893 = vsub.f32 %v1891, %v1892
        %v1894 = vand.u32 %v1893, 4294901760
        %1895 = vmatmul.f32.gmra.mxu0 %v1894
        %v1896 = vpop.f32.mrf.mxu0
        %v1897 = vadd.f32 %v1676, %v1896
        %1898 = vdwg.mxu0
        %1899 = vmatpush.msra.mxu0 0.0
        %1900 = vmatpush.msra.mxu0 0.0
        %1901 = vmatpush.msra.mxu0 0.0
        %1902 = vmatpush.msra.mxu0 0.0
        %1903 = vmatpush.msra.mxu0 0.0
        %1904 = vmatpush.msra.mxu0 0.0
        %1905 = vmatpush.msra.mxu0 0.0
        %1906 = vmatpush.msra.mxu0 0.0
        %1907 = vmatpush.msra.mxu0 0.0
        %1908 = vmatpush.msra.mxu0 0.0
        %1909 = vmatpush.msra.mxu0 0.0
        %1910 = vmatpush.msra.mxu0 0.0
        %1911 = vmatpush.msra.mxu0 0.0
        %1912 = vmatpush.msra.mxu0 0.0
        %v1913 = vand.u32 %v350, 4294901760
        %v1914 = vsub.f32 %v350, %v1913
        %v1915 = vand.u32 %v1914, 4294901760
        %v1916 = vsub.f32 %v1914, %v1915
        %v1917 = vand.u32 %v1916, 4294901760
        %1918 = vmatpush.msra.mxu0 %v1917
        %v1919 = vand.u32 %v348, 4294901760
        %v1920 = vsub.f32 %v348, %v1919
        %v1921 = vand.u32 %v1920, 4294901760
        %v1922 = vsub.f32 %v1920, %v1921
        %v1923 = vand.u32 %v1922, 4294901760
        %1924 = vmatpush.msra.mxu0 %v1923
        %v1925 = vand.u32 %v1711, 4294901760
        %1926 = vmatmul.f32.gmra.mxu0 %v1925
        %v1927 = vpop.f32.mrf.mxu0
        %v1928 = vadd.f32 %v1897, %v1927
        %1929 = vdwg.mxu0
        %1930 = vmatpush.msra.mxu0 0.0
        %1931 = vmatpush.msra.mxu0 0.0
        %1932 = vmatpush.msra.mxu0 0.0
        %1933 = vmatpush.msra.mxu0 0.0
        %1934 = vmatpush.msra.mxu0 0.0
        %1935 = vmatpush.msra.mxu0 0.0
        %1936 = vmatpush.msra.mxu0 0.0
        %1937 = vmatpush.msra.mxu0 0.0
        %1938 = vmatpush.msra.mxu0 0.0
        %1939 = vmatpush.msra.mxu0 0.0
        %1940 = vmatpush.msra.mxu0 0.0
        %1941 = vmatpush.msra.mxu0 0.0
        %1942 = vmatpush.msra.mxu0 0.0
        %1943 = vmatpush.msra.mxu0 0.0
        %v1944 = vand.u32 %v350, 4294901760
        %v1945 = vsub.f32 %v350, %v1944
        %1946 = vmatpush.msra.mxu0 %v1945
        %v1947 = vand.u32 %v348, 4294901760
        %v1948 = vsub.f32 %v348, %v1947
        %1949 = vmatpush.msra.mxu0 %v1948
        %v1950 = vand.u32 %v1711, 4294901760
        %v1951 = vsub.f32 %v1711, %v1950
        %1952 = vmatmul.f32.gmra.mxu0 %v1951
        %v1953 = vpop.f32.mrf.mxu0
        %v1954 = vadd.f32 %v1928, %v1953
        %1955 = vdwg.mxu0
        %1956 = vmatpush.msra.mxu0 0.0
        %1957 = vmatpush.msra.mxu0 0.0
        %1958 = vmatpush.msra.mxu0 0.0
        %1959 = vmatpush.msra.mxu0 0.0
        %1960 = vmatpush.msra.mxu0 0.0
        %1961 = vmatpush.msra.mxu0 0.0
        %1962 = vmatpush.msra.mxu0 0.0
        %1963 = vmatpush.msra.mxu0 0.0
        %1964 = vmatpush.msra.mxu0 0.0
        %1965 = vmatpush.msra.mxu0 0.0
        %1966 = vmatpush.msra.mxu0 0.0
        %1967 = vmatpush.msra.mxu0 0.0
        %1968 = vmatpush.msra.mxu0 0.0
        %1969 = vmatpush.msra.mxu0 0.0
        %v1970 = vand.u32 %v350, 4294901760
        %1971 = vmatpush.msra.mxu0 %v1970
        %v1972 = vand.u32 %v348, 4294901760
        %1973 = vmatpush.msra.mxu0 %v1972
        %v1974 = vand.u32 %v1711, 4294901760
        %v1975 = vsub.f32 %v1711, %v1974
        %v1976 = vand.u32 %v1975, 4294901760
        %1977 = vmatmul.f32.gmra.mxu0 %v1976
        %v1978 = vpop.f32.mrf.mxu0
        %v1979 = vadd.f32 %v1954, %v1978
        %1980 = vdwg.mxu0
        %1981 = vmatpush.msra.mxu0 0.0
        %1982 = vmatpush.msra.mxu0 0.0
        %1983 = vmatpush.msra.mxu0 0.0
        %1984 = vmatpush.msra.mxu0 0.0
        %1985 = vmatpush.msra.mxu0 0.0
        %1986 = vmatpush.msra.mxu0 0.0
        %1987 = vmatpush.msra.mxu0 0.0
        %1988 = vmatpush.msra.mxu0 0.0
        %1989 = vmatpush.msra.mxu0 0.0
        %1990 = vmatpush.msra.mxu0 0.0
        %1991 = vmatpush.msra.mxu0 0.0
        %1992 = vmatpush.msra.mxu0 0.0
        %1993 = vmatpush.msra.mxu0 0.0
        %1994 = vmatpush.msra.mxu0 0.0
        %v1995 = vand.u32 %v350, 4294901760
        %v1996 = vsub.f32 %v350, %v1995
        %v1997 = vand.u32 %v1996, 4294901760
        %1998 = vmatpush.msra.mxu0 %v1997
        %v1999 = vand.u32 %v348, 4294901760
        %v2000 = vsub.f32 %v348, %v1999
        %v2001 = vand.u32 %v2000, 4294901760
        %2002 = vmatpush.msra.mxu0 %v2001
        %v2003 = vand.u32 %v1711, 4294901760
        %2004 = vmatmul.f32.gmra.mxu0 %v2003
        %v2005 = vpop.f32.mrf.mxu0
        %v2006 = vadd.f32 %v1979, %v2005
        %2007 = vdwg.mxu0
        %2008 = vmatpush.msra.mxu0 0.0
        %2009 = vmatpush.msra.mxu0 0.0
        %2010 = vmatpush.msra.mxu0 0.0
        %2011 = vmatpush.msra.mxu0 0.0
        %2012 = vmatpush.msra.mxu0 0.0
        %2013 = vmatpush.msra.mxu0 0.0
        %2014 = vmatpush.msra.mxu0 0.0
        %2015 = vmatpush.msra.mxu0 0.0
        %2016 = vmatpush.msra.mxu0 0.0
        %2017 = vmatpush.msra.mxu0 0.0
        %2018 = vmatpush.msra.mxu0 0.0
        %2019 = vmatpush.msra.mxu0 0.0
        %2020 = vmatpush.msra.mxu0 0.0
        %2021 = vmatpush.msra.mxu0 0.0
        %v2022 = vand.u32 %v350, 4294901760
        %2023 = vmatpush.msra.mxu0 %v2022
        %v2024 = vand.u32 %v348, 4294901760
        %2025 = vmatpush.msra.mxu0 %v2024
        %v2026 = vand.u32 %v1711, 4294901760
        %2027 = vmatmul.f32.gmra.mxu0 %v2026
        %v2028 = vpop.f32.mrf.mxu0
        %v2029 = vadd.f32 %v2006, %v2028
        %2030 = vdwg.mxu0
        %v2031 = vxor.u32 %v1870, 2147483648
        %v2032 = vxor.u32 %v2029, 2147483648
        %v2033 = vmul.f32 %v2031, 1.442695
        %v2034 = vpow.pop %v2033
        %v2035 = vmul.f32 %v2032, 1.442695
        %v2036 = vpow.pop %v2035
        %v2037 = vadd.f32 %v2034, 1.0
        %v2038 = vadd.f32 %v2036, 1.0
        %v2039 = vrcp.pop %v2037
        %v2040 = vmul.f32 %v2037, %v2039
        %v2041 = vsub.f32 1.0, %v2040
        %v2042 = vmul.f32 %v2039, %v2041
        %v2043 = vadd.f32 %v2039, %v2042
        %vm2044 = vweird.f32 %v2037
        %vm2045 = vweird.f32 %v2039
        %vm2046 = vmor %vm2044, %vm2045
        %v2047 = vsel %vm2046, %v2039, %v2043
        %v2048 = vand.u32 2147483647, %v2037
        %vm2049 = vcmp.eq.f32.partialorder %v2048, 8.507059e+37
        %v2050 = vand.u32 %v2037, 2147483648
        %v2051 = vor.u32 1.1754944e-38, %v2050
        %v2052 = vsel %vm2049, %v2051, %v2047
        %v2053 = vmul.f32 1.0, %v2052
        %v2054 = vrcp.pop %v2038
        %v2055 = vmul.f32 %v2038, %v2054
        %v2056 = vsub.f32 1.0, %v2055
        %v2057 = vmul.f32 %v2054, %v2056
        %v2058 = vadd.f32 %v2054, %v2057
        %vm2059 = vweird.f32 %v2038
        %vm2060 = vweird.f32 %v2054
        %vm2061 = vmor %vm2059, %vm2060
        %v2062 = vsel %vm2061, %v2054, %v2058
        %v2063 = vand.u32 2147483647, %v2038
        %vm2064 = vcmp.eq.f32.partialorder %v2063, 8.507059e+37
        %v2065 = vand.u32 %v2038, 2147483648
        %v2066 = vor.u32 1.1754944e-38, %v2065
        %v2067 = vsel %vm2064, %v2066, %v2062
        %v2068 = vmul.f32 1.0, %v2067
        %2069 = vst [vmem:[%s345] sm:$0xff] %v2053
        %2070 = vst [vmem:[%s345 + $0x8] sm:$0xff] %v2068
        %s2071 = smul.u32 32, %s25
        %p2072 = scmp.lt.s32.totalorder %s24, 1
        %s2073 = scalar_select %p2072, %s24, 1
        %p2074 = scmp.lt.s32.totalorder %s2071, 31
        %s2075 = scalar_select %p2074, %s2071, 31
        %s2076 = smul.addr %s2073, 32
        %s2077 = sadd.s32 %s2075, %s2076
        %s2078 = smul.addr %s2077, 8
        %s2079 = scalar_lea.vmem %s5, %s2078
        %s2080 = smul.u32 2, %s25
        %p2081 = scmp.lt.s32.totalorder %s24, 1
        %s2082 = scalar_select %p2081, %s24, 1
        %p2083 = scmp.lt.s32.totalorder %s2080, 1
        %s2084 = scalar_select %p2083, %s2080, 1
        %s2085 = smul.addr %s2082, 2
        %s2086 = sadd.s32 %s2084, %s2085
        %s2087 = smul.addr %s2086, 8
        %s2088 = scalar_lea.vmem %s6, %s2087
        // Predicated region
        $region49: #{primary_mat_caps.1} parent=39 // pred_check
          %p2089 = pneg %p164
        $region50: #{primary_mat_caps.1} parent=39 // pred_check_branch
          %2091 = sbr.rel (%p2089) target = $region52
        $region51: #{primary_mat_caps.1} parent=39 // pred_region
          %s2092 = smul.u32 32, %s25
        $region52: #{primary_mat_caps.1} parent=39 // pred_fallthru
          _
        // Predicated region
        $region53: #{primary_mat_caps.1} parent=39 // pred_check
          %p2093 = pneg %p192
        $region54: #{primary_mat_caps.1} parent=39 // pred_check_branch
          %2095 = sbr.rel (%p2093) target = $region56
        $region55: #{primary_mat_caps.1} parent=39 // pred_region
          %s2096 = smul.u32 2, %s25
        $region56: #{primary_mat_caps.1} parent=39 // pred_fallthru
          _
      $region40: #{primary_mat_caps.1} parent=5 // pred_fallthru
        _
      %p2097 = scmp.le.s32.totalorder 2, %s15
      // Predicated region
      $region57: #{primary_mat_caps.1} parent=5 // pred_check
        %p2098 = pneg %p2097
      $region58: #{primary_mat_caps.1} parent=5 // pred_check_branch
        %2100 = sbr.rel (%p2098) target = $region60
      $region59: #{primary_mat_caps.1} parent=5 // pred_region
        %s2101 = ssub.s32 %s15, 2
        // Predicated region
        $region61: #{primary_mat_caps.1} parent=59 // pred_check
          %p2102 = pneg %p170
        $region62: #{primary_mat_caps.1} parent=59 // pred_check_branch
          %2104 = sbr.rel (%p2102) target = $region64
        $region63: #{primary_mat_caps.1} parent=59 // pred_region
          %s2105 = smul.u32 32, %s27
          %p2106 = scmp.lt.s32.totalorder %s26, 1
          %s2107 = scalar_select %p2106, %s26, 1
          %p2108 = scmp.lt.s32.totalorder %s2105, 31
          %s2109 = scalar_select %p2108, %s2105, 31
          %s2110 = smul.addr %s2107, 32
          %s2111 = sadd.s32 %s2109, %s2110
          %s2112 = smul.addr %s2111, 8
          %s2113 = scalar_lea.vmem %s5, %s2112
        $region64: #{primary_mat_caps.1} parent=59 // pred_fallthru
          _
        // Predicated region
        $region65: #{primary_mat_caps.1} parent=59 // pred_check
          %p2114 = pneg %p198
        $region66: #{primary_mat_caps.1} parent=59 // pred_check_branch
          %2116 = sbr.rel (%p2114) target = $region68
        $region67: #{primary_mat_caps.1} parent=59 // pred_region
          %s2117 = smul.u32 2, %s27
          %p2118 = scmp.lt.s32.totalorder %s26, 1
          %s2119 = scalar_select %p2118, %s26, 1
          %p2120 = scmp.lt.s32.totalorder %s2117, 1
          %s2121 = scalar_select %p2120, %s2117, 1
          %s2122 = smul.addr %s2119, 2
          %s2123 = sadd.s32 %s2121, %s2122
          %s2124 = smul.addr %s2123, 8
          %s2125 = scalar_lea.vmem %s6, %s2124
        $region68: #{primary_mat_caps.1} parent=59 // pred_fallthru
          _
      $region60: #{primary_mat_caps.1} parent=5 // pred_fallthru
        _
    $region6: #{primary_mat_caps.1} parent=1 // loop_footer
      %s19 = sadd.s32 1, %s15
    $region7: #{primary_mat_caps.1} parent=1 // loop_footer_branch
      %14 = sbr.rel target = $region3
    $region8: #{primary_mat_caps.1} parent=1 // loop_exit
      _
    %2126 = vsyncpa [#allocation3], 1
    %s2127 = scalar_lea.sflag [#allocation3], 1
    %2128 = vsyncpa %s2127, 1
    %2129 = vsyncpa [#allocation5], 1

</llo_original>
